<compile_context>
chip_gen: v6e
topology: v6e:2x2x1
jax: 0.10.0
libtpu: 0.0.40
codegen_flags: <defaults>
</compile_context>

<pallas_src>
import math
import functools

import jax
import jax.numpy as jnp
from jax.experimental import pallas as pl
from jax.experimental.pallas import tpu as pltpu


def _self_attention_kernel(x_ref, w_ref, o_ref, *, batch, seq, num_heads, head_dim):
    """Single-invocation multi-head self-attention + residual.

    x_ref : (B, S, H)   VMEM -- hidden states (also the residual)
    w_ref : (H, 3*H)    VMEM -- fused [Wq * 1/sqrt(dh) | Wk | Wv]
    o_ref : (B, S, H)   VMEM -- attention(x) + x, one lane-dense store
    """
    hidden = num_heads * head_dim

    x = x_ref[...]                                   # (B, S, H), input dtype
    x2d = x.reshape(batch * seq, hidden)             # merge leading dims only
    w = w_ref[...]                                   # (H, 3H)

    # Fused Q|K|V projection: one MXU matmul, f32 accumulation.
    qkv = jnp.dot(x2d, w, preferred_element_type=jnp.float32)   # (B*S, 3H) f32

    compute_dtype = x.dtype   # bf16 inputs keep the MXU on the bf16 path

    def split_heads(block2d):
        # (B*S, nh*dh) -> (nh*B, S, dh) using only static lane slices, a
        # leading-axis stack and leading-dim reshapes (no minor-dim transpose).
        parts = [
            block2d[:, h * head_dim:(h + 1) * head_dim].reshape(batch, seq, head_dim)
            for h in range(num_heads)
        ]
        return jnp.stack(parts, axis=0).reshape(num_heads * batch, seq, head_dim)

    q = split_heads(qkv[:, :hidden])              # scale already folded into Wq
    k = split_heads(qkv[:, hidden:2 * hidden])
    v = split_heads(qkv[:, 2 * hidden:]).astype(compute_dtype)

    # Scores: batched over (head, batch); contract head_dim directly (no k.T).
    s = jnp.einsum("gqd,gkd->gqk", q, k,
                   preferred_element_type=jnp.float32)          # (g, S, S) f32

    # Numerically-stable softmax over keys, all math in f32.
    s = s - jnp.max(s, axis=-1, keepdims=True)
    p = jnp.exp(s)
    denom = jnp.sum(p, axis=-1, keepdims=True)
    p = p * pl.reciprocal(denom, approx=False)    # exact; runs on the EUP slot

    # Context: probs cast to the input dtype so bf16 inputs use the bf16 MXU
    # rate; accumulation stays f32 via preferred_element_type.
    ctx = jnp.einsum("gqk,gkd->gqd", p.astype(compute_dtype), v,
                     preferred_element_type=jnp.float32)        # (g, S, dh) f32

    # (nh*B, S, dh) -> (B, S, H): split the leading dim, then concatenate the
    # per-head slices on the lane axis => one lane-dense output store.
    ctx = ctx.reshape(num_heads, batch, seq, head_dim)
    out = jnp.concatenate([ctx[h] for h in range(num_heads)], axis=-1)  # (B,S,H)

    # Residual connection taken from the already-resident x.
    o_ref[...] = (out + x.astype(jnp.float32)).astype(o_ref.dtype)


def self_attention(hidden_states, wq, wk, wv, *, num_heads):
    """hidden_states: (B, S, H); wq/wk/wv: (H, H) with y = x @ W convention."""
    B, S, H = hidden_states.shape
    assert H % num_heads == 0
    dh = H // num_heads

    # Fold the 1/sqrt(dh) score scale into Wq once on the host.
    scale = 1.0 / math.sqrt(dh)
    wq_scaled = (wq.astype(jnp.float32) * scale).astype(wq.dtype)
    # Fused projection weight: columns = [Q heads | K heads | V heads].
    w_qkv = jnp.concatenate([wq_scaled, wk, wv], axis=1)        # (H, 3H)

    kernel = functools.partial(_self_attention_kernel,
                               batch=B, seq=S, num_heads=num_heads, head_dim=dh)

    # Single invocation: no grid, whole (tiny) operands resident in VMEM.
    return pl.pallas_call(
        kernel,
        out_shape=jax.ShapeDtypeStruct((B, S, H), hidden_states.dtype),
        in_specs=[
            pl.BlockSpec(memory_space=pltpu.MemorySpace.VMEM),
            pl.BlockSpec(memory_space=pltpu.MemorySpace.VMEM),
        ],
        out_specs=pl.BlockSpec(memory_space=pltpu.MemorySpace.VMEM),
    )(hidden_states, w_qkv)


def reference_self_attention(x, wq, wk, wv, *, num_heads):
    """Pure-JAX reference mirroring the PyTorch forward (eval mode)."""
    B, S, H = x.shape
    dh = H // num_heads

    def split_heads(t):  # (B, S, H) -> (B, nh, S, dh)
        return t.reshape(B, S, num_heads, dh).transpose(0, 2, 1, 3)

    q = split_heads(x @ wq)
    k = split_heads(x @ wk)
    v = split_heads(x @ wv)
    scores = jnp.einsum("bhqd,bhkd->bhqk", q, k) / math.sqrt(dh)
    probs = jax.nn.softmax(scores, axis=-1)
    ctx = jnp.einsum("bhqk,bhkd->bhqd", probs, v)
    ctx = ctx.transpose(0, 2, 1, 3).reshape(B, S, H)
    return ctx + x


if __name__ == "__main__":
    B, S, H = 2, 8, 32
    num_heads = 4

    key = jax.random.PRNGKey(0)
    kx, kq, kk, kv = jax.random.split(key, 4)

    x = jax.random.normal(kx, (B, S, H), dtype=jnp.float32)
    # nn.Linear(H, H, bias=False) weight is (out, in); y = x @ W.T.
    bound = 1.0 / math.sqrt(H)
    Wq = jax.random.uniform(kq, (H, H), jnp.float32, -bound, bound)
    Wk = jax.random.uniform(kk, (H, H), jnp.float32, -bound, bound)
    Wv = jax.random.uniform(kv, (H, H), jnp.float32, -bound, bound)
    wq, wk, wv = Wq.T, Wk.T, Wv.T

    ref = reference_self_attention(x, wq, wk, wv, num_heads=num_heads)

    # --- f32 path (exact reciprocal => tighter tolerance than before) ---
    out = self_attention(x, wq, wk, wv, num_heads=num_heads)
    out = jax.block_until_ready(out)
    assert out.shape == (B, S, H)
    assert jnp.allclose(out, ref, atol=1e-3, rtol=1e-3), "f32 mismatch vs reference"

    # --- bf16 path: projection + PV matmul use the bf16 MXU path; softmax and
    # accumulation stay f32 inside the kernel. ---
    xb, wqb, wkb, wvb = (t.astype(jnp.bfloat16) for t in (x, wq, wk, wv))
    out_bf16 = self_attention(xb, wqb, wkb, wvb, num_heads=num_heads)
    out_bf16 = jax.block_until_ready(out_bf16)
    assert out_bf16.dtype == jnp.bfloat16
    assert jnp.allclose(out_bf16.astype(jnp.float32), ref, atol=1e-1, rtol=1e-1), \
        "bf16 mismatch vs reference"

    print("KERNEL_OK")
</pallas_src>

<mosaic_0001>
module attributes {stable_mosaic.version = 11 : i64} {
  func.func @_self_attention_kernel(%arg0: memref<2x8x32xf32, #tpu.memory_space<vmem>>, %arg1: memref<32x96xf32, #tpu.memory_space<vmem>>, %arg2: memref<2x8x32xf32, #tpu.memory_space<vmem>>) attributes {dimension_semantics = [], scalar_prefetch = 0 : i64, scratch_operands = 0 : i64, tpu.core_type = #tpu.core_type<tc>} {
    %c0 = arith.constant 0 : index
    %c0_0 = arith.constant 0 : index
    %c0_1 = arith.constant 0 : index
    %0 = vector.load %arg0[%c0, %c0_0, %c0_1] : memref<2x8x32xf32, #tpu.memory_space<vmem>>, vector<2x8x32xf32>
    %1 = vector.shape_cast %0 : vector<2x8x32xf32> to vector<16x32xf32>
    %c0_2 = arith.constant 0 : index
    %c0_3 = arith.constant 0 : index
    %2 = vector.load %arg1[%c0_2, %c0_3] : memref<32x96xf32, #tpu.memory_space<vmem>>, vector<32x96xf32>
    %cst = arith.constant dense<0.000000e+00> : vector<16x96xf32>
    %3 = tpu.matmul %1, %2, %cst {dimension_numbers = #tpu.dot_dimension_numbers<[1], [0], [0], [1], [0, 0, 1, 1], [], []>} : vector<16x32xf32>, vector<32x96xf32>, vector<16x96xf32> -> vector<16x96xf32>
    %4 = vector.extract_strided_slice %3 {offsets = [0, 0], sizes = [16, 32], strides = [1, 1]} : vector<16x96xf32> to vector<16x32xf32>
    %5 = vector.extract_strided_slice %4 {offsets = [0, 0], sizes = [16, 8], strides = [1, 1]} : vector<16x32xf32> to vector<16x8xf32>
    %6 = vector.shape_cast %5 : vector<16x8xf32> to vector<2x8x8xf32>
    %7 = vector.extract_strided_slice %4 {offsets = [0, 8], sizes = [16, 8], strides = [1, 1]} : vector<16x32xf32> to vector<16x8xf32>
    %8 = vector.shape_cast %7 : vector<16x8xf32> to vector<2x8x8xf32>
    %9 = vector.extract_strided_slice %4 {offsets = [0, 16], sizes = [16, 8], strides = [1, 1]} : vector<16x32xf32> to vector<16x8xf32>
    %10 = vector.shape_cast %9 : vector<16x8xf32> to vector<2x8x8xf32>
    %11 = vector.extract_strided_slice %4 {offsets = [0, 24], sizes = [16, 8], strides = [1, 1]} : vector<16x32xf32> to vector<16x8xf32>
    %12 = vector.shape_cast %11 : vector<16x8xf32> to vector<2x8x8xf32>
    %13 = vector.shape_cast %6 : vector<2x8x8xf32> to vector<1x2x8x8xf32>
    %14 = vector.shape_cast %8 : vector<2x8x8xf32> to vector<1x2x8x8xf32>
    %15 = vector.shape_cast %10 : vector<2x8x8xf32> to vector<1x2x8x8xf32>
    %16 = vector.shape_cast %12 : vector<2x8x8xf32> to vector<1x2x8x8xf32>
    %17 = tpu.concatenate %13, %14, %15, %16 in 0 : vector<1x2x8x8xf32>, vector<1x2x8x8xf32>, vector<1x2x8x8xf32>, vector<1x2x8x8xf32> -> vector<4x2x8x8xf32>
    %18 = vector.shape_cast %17 : vector<4x2x8x8xf32> to vector<8x8x8xf32>
    %19 = vector.extract_strided_slice %3 {offsets = [0, 32], sizes = [16, 32], strides = [1, 1]} : vector<16x96xf32> to vector<16x32xf32>
    %20 = vector.extract_strided_slice %19 {offsets = [0, 0], sizes = [16, 8], strides = [1, 1]} : vector<16x32xf32> to vector<16x8xf32>
    %21 = vector.shape_cast %20 : vector<16x8xf32> to vector<2x8x8xf32>
    %22 = vector.extract_strided_slice %19 {offsets = [0, 8], sizes = [16, 8], strides = [1, 1]} : vector<16x32xf32> to vector<16x8xf32>
    %23 = vector.shape_cast %22 : vector<16x8xf32> to vector<2x8x8xf32>
    %24 = vector.extract_strided_slice %19 {offsets = [0, 16], sizes = [16, 8], strides = [1, 1]} : vector<16x32xf32> to vector<16x8xf32>
    %25 = vector.shape_cast %24 : vector<16x8xf32> to vector<2x8x8xf32>
    %26 = vector.extract_strided_slice %19 {offsets = [0, 24], sizes = [16, 8], strides = [1, 1]} : vector<16x32xf32> to vector<16x8xf32>
    %27 = vector.shape_cast %26 : vector<16x8xf32> to vector<2x8x8xf32>
    %28 = vector.shape_cast %21 : vector<2x8x8xf32> to vector<1x2x8x8xf32>
    %29 = vector.shape_cast %23 : vector<2x8x8xf32> to vector<1x2x8x8xf32>
    %30 = vector.shape_cast %25 : vector<2x8x8xf32> to vector<1x2x8x8xf32>
    %31 = vector.shape_cast %27 : vector<2x8x8xf32> to vector<1x2x8x8xf32>
    %32 = tpu.concatenate %28, %29, %30, %31 in 0 : vector<1x2x8x8xf32>, vector<1x2x8x8xf32>, vector<1x2x8x8xf32>, vector<1x2x8x8xf32> -> vector<4x2x8x8xf32>
    %33 = vector.shape_cast %32 : vector<4x2x8x8xf32> to vector<8x8x8xf32>
    %34 = vector.extract_strided_slice %3 {offsets = [0, 64], sizes = [16, 32], strides = [1, 1]} : vector<16x96xf32> to vector<16x32xf32>
    %35 = vector.extract_strided_slice %34 {offsets = [0, 0], sizes = [16, 8], strides = [1, 1]} : vector<16x32xf32> to vector<16x8xf32>
    %36 = vector.shape_cast %35 : vector<16x8xf32> to vector<2x8x8xf32>
    %37 = vector.extract_strided_slice %34 {offsets = [0, 8], sizes = [16, 8], strides = [1, 1]} : vector<16x32xf32> to vector<16x8xf32>
    %38 = vector.shape_cast %37 : vector<16x8xf32> to vector<2x8x8xf32>
    %39 = vector.extract_strided_slice %34 {offsets = [0, 16], sizes = [16, 8], strides = [1, 1]} : vector<16x32xf32> to vector<16x8xf32>
    %40 = vector.shape_cast %39 : vector<16x8xf32> to vector<2x8x8xf32>
    %41 = vector.extract_strided_slice %34 {offsets = [0, 24], sizes = [16, 8], strides = [1, 1]} : vector<16x32xf32> to vector<16x8xf32>
    %42 = vector.shape_cast %41 : vector<16x8xf32> to vector<2x8x8xf32>
    %43 = vector.shape_cast %36 : vector<2x8x8xf32> to vector<1x2x8x8xf32>
    %44 = vector.shape_cast %38 : vector<2x8x8xf32> to vector<1x2x8x8xf32>
    %45 = vector.shape_cast %40 : vector<2x8x8xf32> to vector<1x2x8x8xf32>
    %46 = vector.shape_cast %42 : vector<2x8x8xf32> to vector<1x2x8x8xf32>
    %47 = tpu.concatenate %43, %44, %45, %46 in 0 : vector<1x2x8x8xf32>, vector<1x2x8x8xf32>, vector<1x2x8x8xf32>, vector<1x2x8x8xf32> -> vector<4x2x8x8xf32>
    %48 = vector.shape_cast %47 : vector<4x2x8x8xf32> to vector<8x8x8xf32>
    "tpu.trace_start"() <{level = 10 : i32, message = "gqd,gkd->gqk"}> : () -> ()
    %cst_4 = arith.constant dense<0.000000e+00> : vector<8x8x8xf32>
    %49 = tpu.matmul %18, %33, %cst_4 {dimension_numbers = #tpu.dot_dimension_numbers<[2], [2], [1], [1], [0, 0, 0, 1, 1, 1], [0], [0]>} : vector<8x8x8xf32>, vector<8x8x8xf32>, vector<8x8x8xf32> -> vector<8x8x8xf32>
    "tpu.trace_stop"() : () -> ()
    %cst_5 = arith.constant dense<0xFF800000> : vector<8x8xf32>
    %50 = vector.multi_reduction <maximumf>, %49, %cst_5 [2] : vector<8x8x8xf32> to vector<8x8xf32>
    %51 = vector.shape_cast %50 : vector<8x8xf32> to vector<8x8x1xf32>
    %52 = vector.broadcast %51 : vector<8x8x1xf32> to vector<8x8x8xf32>
    %53 = arith.subf %49, %52 : vector<8x8x8xf32>
    %54 = math.exp %53 : vector<8x8x8xf32>
    %cst_6 = arith.constant dense<0.000000e+00> : vector<8x8xf32>
    %55 = vector.multi_reduction <add>, %54, %cst_6 [2] : vector<8x8x8xf32> to vector<8x8xf32>
    %56 = vector.shape_cast %55 : vector<8x8xf32> to vector<8x8x1xf32>
    %57 = tpu.reciprocal %56 : vector<8x8x1xf32> -> vector<8x8x1xf32>
    %58 = vector.broadcast %57 : vector<8x8x1xf32> to vector<8x8x8xf32>
    %59 = arith.mulf %54, %58 : vector<8x8x8xf32>
    "tpu.trace_start"() <{level = 10 : i32, message = "gqk,gkd->gqd"}> : () -> ()
    %cst_7 = arith.constant dense<0.000000e+00> : vector<8x8x8xf32>
    %60 = tpu.matmul %59, %48, %cst_7 {dimension_numbers = #tpu.dot_dimension_numbers<[2], [1], [1], [2], [0, 0, 0, 1, 1, 2], [0], [0]>} : vector<8x8x8xf32>, vector<8x8x8xf32>, vector<8x8x8xf32> -> vector<8x8x8xf32>
    "tpu.trace_stop"() : () -> ()
    %61 = vector.shape_cast %60 : vector<8x8x8xf32> to vector<4x2x8x8xf32>
    %62 = vector.extract_strided_slice %61 {offsets = [0, 0, 0, 0], sizes = [1, 2, 8, 8], strides = [1, 1, 1, 1]} : vector<4x2x8x8xf32> to vector<1x2x8x8xf32>
    %63 = vector.shape_cast %62 : vector<1x2x8x8xf32> to vector<2x8x8xf32>
    %64 = vector.extract_strided_slice %61 {offsets = [1, 0, 0, 0], sizes = [1, 2, 8, 8], strides = [1, 1, 1, 1]} : vector<4x2x8x8xf32> to vector<1x2x8x8xf32>
    %65 = vector.shape_cast %64 : vector<1x2x8x8xf32> to vector<2x8x8xf32>
    %66 = vector.extract_strided_slice %61 {offsets = [2, 0, 0, 0], sizes = [1, 2, 8, 8], strides = [1, 1, 1, 1]} : vector<4x2x8x8xf32> to vector<1x2x8x8xf32>
    %67 = vector.shape_cast %66 : vector<1x2x8x8xf32> to vector<2x8x8xf32>
    %68 = vector.extract_strided_slice %61 {offsets = [3, 0, 0, 0], sizes = [1, 2, 8, 8], strides = [1, 1, 1, 1]} : vector<4x2x8x8xf32> to vector<1x2x8x8xf32>
    %69 = vector.shape_cast %68 : vector<1x2x8x8xf32> to vector<2x8x8xf32>
    %70 = tpu.concatenate %63, %65, %67, %69 in 2 : vector<2x8x8xf32>, vector<2x8x8xf32>, vector<2x8x8xf32>, vector<2x8x8xf32> -> vector<2x8x32xf32>
    %71 = arith.addf %70, %0 : vector<2x8x32xf32>
    %c0_8 = arith.constant 0 : index
    %c0_9 = arith.constant 0 : index
    %c0_10 = arith.constant 0 : index
    %72 = vector.load %arg2[%c0_8, %c0_9, %c0_10] : memref<2x8x32xf32, #tpu.memory_space<vmem>>, vector<2x8x32xf32>
    tpu.vector_store %arg2[%c0_8, %c0_9, %c0_10], %71 {strides = array<i32>} : memref<2x8x32xf32, #tpu.memory_space<vmem>>, vector<2x8x32xf32>,
    return
  }
}

</mosaic_0001>

<llo_original>
// kernel: tpu_custom_call.1
$region0: #{tpu_custom_call.1}
  #allocation0 [shape = 'u32[]', space=smem, size = 0x4, offset = 0x4, fixed_abs, tag = 'smem constant byte address 0x4 - core index']
  #allocation1 [shape = 'u32[144,128]{1,0:T(1,128)}', space=vmem, size = 0x12000, scoped, tag = 'internal scratch']
  %s0 = inlined_call_operand.hbm [shape: f32[2,8,32], index: 0, kind: input, shape index: {}]
  %s1 = inlined_call_operand.hbm [shape: f32[32,96], index: 1, kind: input, shape index: {}]
  %s2 = inlined_call_operand.hbm [shape: f32[2,8,32], index: 2, kind: output, shape index: {}]
  %s3 = sld [smem:[#allocation0]]
  $region26: #{tpu_custom_call.1} parent=0
    _
  %s5 = ssub.s32 1, %s3
  %s6 = scalar_select 0, %s5, %s3
  $region1: #{tpu_custom_call.1} parent=0
    #allocation2 [shape = 'u8[8192]{0}', space=vmem, size = 0x2000, scoped, tag = 'input window, operand 0, single buffered']
    #allocation3 [shape = 's32[1]{0}', space=sflag, size = 0x4, scoped, tag = 'scoped memory for tpu_custom_call.1']
    #allocation4 [shape = 's32[1]{0}', space=sflag, size = 0x4, scoped, tag = 'scoped memory for tpu_custom_call.1']
    #allocation5 [shape = 'u8[16384]{0}', space=vmem, size = 0x4000, scoped, tag = 'input window, operand 1, single buffered']
    #allocation6 [shape = 's32[1]{0}', space=sflag, size = 0x4, scoped, tag = 'scoped memory for tpu_custom_call.1']
    #allocation7 [shape = 'u8[8192]{0}', space=vmem, size = 0x2000, scoped, tag = 'output window, operand 0, single buffered']
    %7 = vsyncpa [#allocation3], 0
    %8 = vsyncpa [#allocation6], 0
    %9 = vsyncpa [#allocation4], 0
    // Predicated region
    $region2: #{tpu_custom_call.1} parent=1 // pred_check
      _
    $region3: #{tpu_custom_call.1} parent=1 // pred_check_branch
      %11 = sbr.rel (0) target = $region5
    $region4: #{tpu_custom_call.1} parent=1 // pred_region
      %s13 = ssub.s32 256, 256
      %14 = vsyncadd [#allocation3], %s13
      %s15 = sshll.u32 [#allocation2], 4
      %s16 = int_to_ptr.vmem [resolvable:$true] %s15
      %21 = dma.hbm_to_vmem [thread:$0]  %s0, 256, %s16, [#allocation3], 128, 128, 8
    $region5: #{tpu_custom_call.1} parent=1 // pred_fallthru
      _
    // Predicated region
    $region6: #{tpu_custom_call.1} parent=1 // pred_check
      _
    $region7: #{tpu_custom_call.1} parent=1 // pred_check_branch
      %23 = sbr.rel (0) target = $region9
    $region8: #{tpu_custom_call.1} parent=1 // pred_region
      %s25 = ssub.s32 512, 512
      %26 = vsyncadd [#allocation6], %s25
      %s27 = sshll.u32 [#allocation5], 4
      %s28 = int_to_ptr.vmem [resolvable:$true] %s27
      %33 = dma.hbm_to_vmem [thread:$0]  %s1, 512, %s28, [#allocation6], 128, 128, 8
    $region9: #{tpu_custom_call.1} parent=1 // pred_fallthru
      _
    // Predicated region
    $region10: #{tpu_custom_call.1} parent=1 // pred_check
      _
    $region11: #{tpu_custom_call.1} parent=1 // pred_check_branch
      %35 = sbr.rel (0) target = $region13
    $region12: #{tpu_custom_call.1} parent=1 // pred_region
      %36 = dma.done [#allocation3], 256
    $region13: #{tpu_custom_call.1} parent=1 // pred_fallthru
      _
    // Predicated region
    $region14: #{tpu_custom_call.1} parent=1 // pred_check
      _
    $region15: #{tpu_custom_call.1} parent=1 // pred_check_branch
      %38 = sbr.rel (0) target = $region17
    $region16: #{tpu_custom_call.1} parent=1 // pred_region
      %39 = dma.done [#allocation6], 512
    $region17: #{tpu_custom_call.1} parent=1 // pred_fallthru
      _
    %v40 = vld [vmem:[#allocation2] sm:$0xff]
    %v41 = vld [vmem:[#allocation2 + $0x8] sm:$0xff]
    %v42 = vld [vmem:[#allocation5] sm:$0xff]
    %v43 = vld [vmem:[#allocation5 + $0x8] sm:$0xff]
    %v44 = vld [vmem:[#allocation5 + $0x10] sm:$0xff]
    %v45 = vld [vmem:[#allocation5 + $0x18] sm:$0xff]
    %vm46 = vcmask 261120
    %v48 = vsel %vm46, %v40, 0
    %v51 = vsel %vm46, %v41, 0
    %53 = vmatprep.subr.mxu0 0.0
    %54 = vmatpush1.msra.mxu0 0.0
    %55 = vmatprep.subr.mxu0 0.0
    %56 = vmatpush1.msra.mxu0 0.0
    %57 = vmatprep.subr.mxu0 0.0
    %58 = vmatpush1.msra.mxu0 0.0
    %59 = vmatprep.subr.mxu0 0.0
    %60 = vmatpush1.msra.mxu0 0.0
    %61 = vmatprep.subr.mxu0 0.0
    %62 = vmatpush1.msra.mxu0 0.0
    %63 = vmatprep.subr.mxu0 0.0
    %64 = vmatpush1.msra.mxu0 0.0
    %65 = vmatprep.subr.mxu0 0.0
    %66 = vmatpush1.msra.mxu0 0.0
    %67 = vmatprep.subr.mxu0 0.0
    %68 = vmatpush1.msra.mxu0 0.0
    %69 = vmatprep.subr.mxu0 0.0
    %70 = vmatpush1.msra.mxu0 0.0
    %71 = vmatprep.subr.mxu0 0.0
    %72 = vmatpush1.msra.mxu0 0.0
    %73 = vmatprep.subr.mxu0 0.0
    %74 = vmatpush1.msra.mxu0 0.0
    %75 = vmatprep.subr.mxu0 0.0
    %76 = vmatpush1.msra.mxu0 0.0
    %77 = vmatprep.subr.mxu0 0.0
    %78 = vmatpush1.msra.mxu0 %v45
    %79 = vmatprep.subr.mxu0 0.0
    %80 = vmatpush1.msra.mxu0 %v44
    %81 = vmatprep.subr.mxu0 0.0
    %82 = vmatpush1.msra.mxu0 %v43
    %83 = vmatprep.subr.mxu0 0.0
    %84 = vmatpush1.msra.mxu0 %v42
    %85 = vmatprep.subr.mxu0 0.0
    %86 = vmatpush2.msra.mxu0 0.0
    %87 = vmatprep.subr.mxu0 0.0
    %88 = vmatpush2.msra.mxu0 0.0
    %89 = vmatprep.subr.mxu0 0.0
    %90 = vmatpush2.msra.mxu0 0.0
    %91 = vmatprep.subr.mxu0 0.0
    %92 = vmatpush2.msra.mxu0 0.0
    %93 = vmatprep.subr.mxu0 0.0
    %94 = vmatpush2.msra.mxu0 0.0
    %95 = vmatprep.subr.mxu0 0.0
    %96 = vmatpush2.msra.mxu0 0.0
    %97 = vmatprep.subr.mxu0 0.0
    %98 = vmatpush2.msra.mxu0 0.0
    %99 = vmatprep.subr.mxu0 0.0
    %100 = vmatpush2.msra.mxu0 0.0
    %101 = vmatprep.subr.mxu0 0.0
    %102 = vmatpush2.msra.mxu0 0.0
    %103 = vmatprep.subr.mxu0 0.0
    %104 = vmatpush2.msra.mxu0 0.0
    %105 = vmatprep.subr.mxu0 0.0
    %106 = vmatpush2.msra.mxu0 0.0
    %107 = vmatprep.subr.mxu0 0.0
    %108 = vmatpush2.msra.mxu0 0.0
    %109 = vmatprep.subr.mxu0 0.0
    %110 = vmatpush2.msra.mxu0 0.0
    %111 = vmatprep.subr.mxu0 0.0
    %112 = vmatpush2.msra.mxu0 0.0
    %113 = vmatprep.subr.mxu0 0.0
    %114 = vmatpush2.msra.mxu0 0.0
    %115 = vmatprep.subr.mxu0 0.0
    %116 = vmatpush2.msra.mxu0 0.0
    %117 = vmatprep.mubr.f32.mxu0 0.0
    %118 = vmatmul.mubr.f32.gmra.mxu0 %v48
    %v119 = vpop.f32.mrf.mxu0
    %v120 = vadd.f32 0.0, %v119
    %v121 = vpop.f32.mrf.mxu0
    %122 = vmatprep.mubr.f32.mxu0 0.0
    %123 = vmatmul.mubr.f32.gmra.mxu0 %v51
    %v124 = vpop.f32.mrf.mxu0
    %v125 = vadd.f32 0.0, %v124
    %v126 = vpop.f32.mrf.mxu0
    %127 = vdwg.mxu0
    %130 = vrot.lane.b32.xlu0 %v120, 120
    %v131 = vpop.permute.xlu0 %130
    %132 = vrot.lane.b32.xlu0 %v125, 120
    %v133 = vpop.permute.xlu0 %132
    %134 = vrot.lane.b32.xlu0 %v120, 112
    %v135 = vpop.permute.xlu0 %134
    %136 = vrot.lane.b32.xlu0 %v125, 112
    %v137 = vpop.permute.xlu0 %136
    %138 = vrot.lane.b32.xlu0 %v120, 104
    %v139 = vpop.permute.xlu0 %138
    %140 = vrot.lane.b32.xlu0 %v125, 104
    %v141 = vpop.permute.xlu0 %140
    %142 = vrot.lane.b32.xlu0 %v120, 96
    %v143 = vpop.permute.xlu0 %142
    %vm144 = vcmask 64512
    %v145 = vsel %vm144, %v120, 0
    %v147 = vsel %vm144, %v143, 0
    %149 = vmatprep.subr.mxu0 0.0
    %150 = vmatpush1.xpose.msra.mxu0 0.0
    %151 = vmatprep.subr.mxu0 0.0
    %152 = vmatpush1.xpose.msra.mxu0 0.0
    %153 = vmatprep.subr.mxu0 0.0
    %154 = vmatpush1.xpose.msra.mxu0 0.0
    %155 = vmatprep.subr.mxu0 0.0
    %156 = vmatpush1.xpose.msra.mxu0 0.0
    %157 = vmatprep.subr.mxu0 0.0
    %158 = vmatpush1.xpose.msra.mxu0 0.0
    %159 = vmatprep.subr.mxu0 0.0
    %160 = vmatpush1.xpose.msra.mxu0 0.0
    %161 = vmatprep.subr.mxu0 0.0
    %162 = vmatpush1.xpose.msra.mxu0 0.0
    %163 = vmatprep.subr.mxu0 0.0
    %164 = vmatpush1.xpose.msra.mxu0 0.0
    %165 = vmatprep.subr.mxu0 0.0
    %166 = vmatpush1.xpose.msra.mxu0 0.0
    %167 = vmatprep.subr.mxu0 0.0
    %168 = vmatpush1.xpose.msra.mxu0 0.0
    %169 = vmatprep.subr.mxu0 0.0
    %170 = vmatpush1.xpose.msra.mxu0 0.0
    %171 = vmatprep.subr.mxu0 0.0
    %172 = vmatpush1.xpose.msra.mxu0 0.0
    %173 = vmatprep.subr.mxu0 0.0
    %174 = vmatpush1.xpose.msra.mxu0 0.0
    %175 = vmatprep.subr.mxu0 0.0
    %176 = vmatpush1.xpose.msra.mxu0 0.0
    %177 = vmatprep.subr.mxu0 0.0
    %178 = vmatpush1.xpose.msra.mxu0 0.0
    %179 = vmatprep.subr.mxu0 0.0
    %180 = vmatpush1.xpose.msra.mxu0 %v147
    %181 = vmatprep.subr.mxu0 0.0
    %182 = vmatpush2.xpose.msra.mxu0 0.0
    %183 = vmatprep.subr.mxu0 0.0
    %184 = vmatpush2.xpose.msra.mxu0 0.0
    %185 = vmatprep.subr.mxu0 0.0
    %186 = vmatpush2.xpose.msra.mxu0 0.0
    %187 = vmatprep.subr.mxu0 0.0
    %188 = vmatpush2.xpose.msra.mxu0 0.0
    %189 = vmatprep.subr.mxu0 0.0
    %190 = vmatpush2.xpose.msra.mxu0 0.0
    %191 = vmatprep.subr.mxu0 0.0
    %192 = vmatpush2.xpose.msra.mxu0 0.0
    %193 = vmatprep.subr.mxu0 0.0
    %194 = vmatpush2.xpose.msra.mxu0 0.0
    %195 = vmatprep.subr.mxu0 0.0
    %196 = vmatpush2.xpose.msra.mxu0 0.0
    %197 = vmatprep.subr.mxu0 0.0
    %198 = vmatpush2.xpose.msra.mxu0 0.0
    %199 = vmatprep.subr.mxu0 0.0
    %200 = vmatpush2.xpose.msra.mxu0 0.0
    %201 = vmatprep.subr.mxu0 0.0
    %202 = vmatpush2.xpose.msra.mxu0 0.0
    %203 = vmatprep.subr.mxu0 0.0
    %204 = vmatpush2.xpose.msra.mxu0 0.0
    %205 = vmatprep.subr.mxu0 0.0
    %206 = vmatpush2.xpose.msra.mxu0 0.0
    %207 = vmatprep.subr.mxu0 0.0
    %208 = vmatpush2.xpose.msra.mxu0 0.0
    %209 = vmatprep.subr.mxu0 0.0
    %210 = vmatpush2.xpose.msra.mxu0 0.0
    %211 = vmatprep.subr.mxu0 0.0
    %212 = vmatpush2.xpose.msra.mxu0 0.0
    %213 = vmatprep.mubr.f32.mxu0 0.0
    %214 = vmatmul.mubr.f32.gmra.mxu0 %v145
    %v215 = vpop.f32.mrf.mxu0
    %v216 = vadd.f32 0.0, %v215
    %v217 = vpop.f32.mrf.mxu0
    %218 = vdwg.mxu0
    %219 = vrot.lane.b32.xlu0 %v125, 96
    %v220 = vpop.permute.xlu0 %219
    %v221 = vsel %vm144, %v125, 0
    %v223 = vsel %vm144, %v220, 0
    %225 = vmatprep.subr.mxu0 0.0
    %226 = vmatpush1.xpose.msra.mxu0 0.0
    %227 = vmatprep.subr.mxu0 0.0
    %228 = vmatpush1.xpose.msra.mxu0 0.0
    %229 = vmatprep.subr.mxu0 0.0
    %230 = vmatpush1.xpose.msra.mxu0 0.0
    %231 = vmatprep.subr.mxu0 0.0
    %232 = vmatpush1.xpose.msra.mxu0 0.0
    %233 = vmatprep.subr.mxu0 0.0
    %234 = vmatpush1.xpose.msra.mxu0 0.0
    %235 = vmatprep.subr.mxu0 0.0
    %236 = vmatpush1.xpose.msra.mxu0 0.0
    %237 = vmatprep.subr.mxu0 0.0
    %238 = vmatpush1.xpose.msra.mxu0 0.0
    %239 = vmatprep.subr.mxu0 0.0
    %240 = vmatpush1.xpose.msra.mxu0 0.0
    %241 = vmatprep.subr.mxu0 0.0
    %242 = vmatpush1.xpose.msra.mxu0 0.0
    %243 = vmatprep.subr.mxu0 0.0
    %244 = vmatpush1.xpose.msra.mxu0 0.0
    %245 = vmatprep.subr.mxu0 0.0
    %246 = vmatpush1.xpose.msra.mxu0 0.0
    %247 = vmatprep.subr.mxu0 0.0
    %248 = vmatpush1.xpose.msra.mxu0 0.0
    %249 = vmatprep.subr.mxu0 0.0
    %250 = vmatpush1.xpose.msra.mxu0 0.0
    %251 = vmatprep.subr.mxu0 0.0
    %252 = vmatpush1.xpose.msra.mxu0 0.0
    %253 = vmatprep.subr.mxu0 0.0
    %254 = vmatpush1.xpose.msra.mxu0 0.0
    %255 = vmatprep.subr.mxu0 0.0
    %256 = vmatpush1.xpose.msra.mxu0 %v223
    %257 = vmatprep.subr.mxu0 0.0
    %258 = vmatpush2.xpose.msra.mxu0 0.0
    %259 = vmatprep.subr.mxu0 0.0
    %260 = vmatpush2.xpose.msra.mxu0 0.0
    %261 = vmatprep.subr.mxu0 0.0
    %262 = vmatpush2.xpose.msra.mxu0 0.0
    %263 = vmatprep.subr.mxu0 0.0
    %264 = vmatpush2.xpose.msra.mxu0 0.0
    %265 = vmatprep.subr.mxu0 0.0
    %266 = vmatpush2.xpose.msra.mxu0 0.0
    %267 = vmatprep.subr.mxu0 0.0
    %268 = vmatpush2.xpose.msra.mxu0 0.0
    %269 = vmatprep.subr.mxu0 0.0
    %270 = vmatpush2.xpose.msra.mxu0 0.0
    %271 = vmatprep.subr.mxu0 0.0
    %272 = vmatpush2.xpose.msra.mxu0 0.0
    %273 = vmatprep.subr.mxu0 0.0
    %274 = vmatpush2.xpose.msra.mxu0 0.0
    %275 = vmatprep.subr.mxu0 0.0
    %276 = vmatpush2.xpose.msra.mxu0 0.0
    %277 = vmatprep.subr.mxu0 0.0
    %278 = vmatpush2.xpose.msra.mxu0 0.0
    %279 = vmatprep.subr.mxu0 0.0
    %280 = vmatpush2.xpose.msra.mxu0 0.0
    %281 = vmatprep.subr.mxu0 0.0
    %282 = vmatpush2.xpose.msra.mxu0 0.0
    %283 = vmatprep.subr.mxu0 0.0
    %284 = vmatpush2.xpose.msra.mxu0 0.0
    %285 = vmatprep.subr.mxu0 0.0
    %286 = vmatpush2.xpose.msra.mxu0 0.0
    %287 = vmatprep.subr.mxu0 0.0
    %288 = vmatpush2.xpose.msra.mxu0 0.0
    %289 = vmatprep.mubr.f32.mxu0 0.0
    %290 = vmatmul.mubr.f32.gmra.mxu0 %v221
    %v291 = vpop.f32.mrf.mxu0
    %v292 = vadd.f32 0.0, %v291
    %v293 = vpop.f32.mrf.mxu0
    %294 = vdwg.mxu0
    %295 = vrot.lane.b32.xlu0 %v131, 96
    %v296 = vpop.permute.xlu0 %295
    %v297 = vsel %vm144, %v131, 0
    %v299 = vsel %vm144, %v296, 0
    %301 = vmatprep.subr.mxu0 0.0
    %302 = vmatpush1.xpose.msra.mxu0 0.0
    %303 = vmatprep.subr.mxu0 0.0
    %304 = vmatpush1.xpose.msra.mxu0 0.0
    %305 = vmatprep.subr.mxu0 0.0
    %306 = vmatpush1.xpose.msra.mxu0 0.0
    %307 = vmatprep.subr.mxu0 0.0
    %308 = vmatpush1.xpose.msra.mxu0 0.0
    %309 = vmatprep.subr.mxu0 0.0
    %310 = vmatpush1.xpose.msra.mxu0 0.0
    %311 = vmatprep.subr.mxu0 0.0
    %312 = vmatpush1.xpose.msra.mxu0 0.0
    %313 = vmatprep.subr.mxu0 0.0
    %314 = vmatpush1.xpose.msra.mxu0 0.0
    %315 = vmatprep.subr.mxu0 0.0
    %316 = vmatpush1.xpose.msra.mxu0 0.0
    %317 = vmatprep.subr.mxu0 0.0
    %318 = vmatpush1.xpose.msra.mxu0 0.0
    %319 = vmatprep.subr.mxu0 0.0
    %320 = vmatpush1.xpose.msra.mxu0 0.0
    %321 = vmatprep.subr.mxu0 0.0
    %322 = vmatpush1.xpose.msra.mxu0 0.0
    %323 = vmatprep.subr.mxu0 0.0
    %324 = vmatpush1.xpose.msra.mxu0 0.0
    %325 = vmatprep.subr.mxu0 0.0
    %326 = vmatpush1.xpose.msra.mxu0 0.0
    %327 = vmatprep.subr.mxu0 0.0
    %328 = vmatpush1.xpose.msra.mxu0 0.0
    %329 = vmatprep.subr.mxu0 0.0
    %330 = vmatpush1.xpose.msra.mxu0 0.0
    %331 = vmatprep.subr.mxu0 0.0
    %332 = vmatpush1.xpose.msra.mxu0 %v299
    %333 = vmatprep.subr.mxu0 0.0
    %334 = vmatpush2.xpose.msra.mxu0 0.0
    %335 = vmatprep.subr.mxu0 0.0
    %336 = vmatpush2.xpose.msra.mxu0 0.0
    %337 = vmatprep.subr.mxu0 0.0
    %338 = vmatpush2.xpose.msra.mxu0 0.0
    %339 = vmatprep.subr.mxu0 0.0
    %340 = vmatpush2.xpose.msra.mxu0 0.0
    %341 = vmatprep.subr.mxu0 0.0
    %342 = vmatpush2.xpose.msra.mxu0 0.0
    %343 = vmatprep.subr.mxu0 0.0
    %344 = vmatpush2.xpose.msra.mxu0 0.0
    %345 = vmatprep.subr.mxu0 0.0
    %346 = vmatpush2.xpose.msra.mxu0 0.0
    %347 = vmatprep.subr.mxu0 0.0
    %348 = vmatpush2.xpose.msra.mxu0 0.0
    %349 = vmatprep.subr.mxu0 0.0
    %350 = vmatpush2.xpose.msra.mxu0 0.0
    %351 = vmatprep.subr.mxu0 0.0
    %352 = vmatpush2.xpose.msra.mxu0 0.0
    %353 = vmatprep.subr.mxu0 0.0
    %354 = vmatpush2.xpose.msra.mxu0 0.0
    %355 = vmatprep.subr.mxu0 0.0
    %356 = vmatpush2.xpose.msra.mxu0 0.0
    %357 = vmatprep.subr.mxu0 0.0
    %358 = vmatpush2.xpose.msra.mxu0 0.0
    %359 = vmatprep.subr.mxu0 0.0
    %360 = vmatpush2.xpose.msra.mxu0 0.0
    %361 = vmatprep.subr.mxu0 0.0
    %362 = vmatpush2.xpose.msra.mxu0 0.0
    %363 = vmatprep.subr.mxu0 0.0
    %364 = vmatpush2.xpose.msra.mxu0 0.0
    %365 = vmatprep.mubr.f32.mxu0 0.0
    %366 = vmatmul.mubr.f32.gmra.mxu0 %v297
    %v367 = vpop.f32.mrf.mxu0
    %v368 = vadd.f32 0.0, %v367
    %v369 = vpop.f32.mrf.mxu0
    %370 = vdwg.mxu0
    %371 = vrot.lane.b32.xlu0 %v133, 96
    %v372 = vpop.permute.xlu0 %371
    %v373 = vsel %vm144, %v133, 0
    %v375 = vsel %vm144, %v372, 0
    %377 = vmatprep.subr.mxu0 0.0
    %378 = vmatpush1.xpose.msra.mxu0 0.0
    %379 = vmatprep.subr.mxu0 0.0
    %380 = vmatpush1.xpose.msra.mxu0 0.0
    %381 = vmatprep.subr.mxu0 0.0
    %382 = vmatpush1.xpose.msra.mxu0 0.0
    %383 = vmatprep.subr.mxu0 0.0
    %384 = vmatpush1.xpose.msra.mxu0 0.0
    %385 = vmatprep.subr.mxu0 0.0
    %386 = vmatpush1.xpose.msra.mxu0 0.0
    %387 = vmatprep.subr.mxu0 0.0
    %388 = vmatpush1.xpose.msra.mxu0 0.0
    %389 = vmatprep.subr.mxu0 0.0
    %390 = vmatpush1.xpose.msra.mxu0 0.0
    %391 = vmatprep.subr.mxu0 0.0
    %392 = vmatpush1.xpose.msra.mxu0 0.0
    %393 = vmatprep.subr.mxu0 0.0
    %394 = vmatpush1.xpose.msra.mxu0 0.0
    %395 = vmatprep.subr.mxu0 0.0
    %396 = vmatpush1.xpose.msra.mxu0 0.0
    %397 = vmatprep.subr.mxu0 0.0
    %398 = vmatpush1.xpose.msra.mxu0 0.0
    %399 = vmatprep.subr.mxu0 0.0
    %400 = vmatpush1.xpose.msra.mxu0 0.0
    %401 = vmatprep.subr.mxu0 0.0
    %402 = vmatpush1.xpose.msra.mxu0 0.0
    %403 = vmatprep.subr.mxu0 0.0
    %404 = vmatpush1.xpose.msra.mxu0 0.0
    %405 = vmatprep.subr.mxu0 0.0
    %406 = vmatpush1.xpose.msra.mxu0 0.0
    %407 = vmatprep.subr.mxu0 0.0
    %408 = vmatpush1.xpose.msra.mxu0 %v375
    %409 = vmatprep.subr.mxu0 0.0
    %410 = vmatpush2.xpose.msra.mxu0 0.0
    %411 = vmatprep.subr.mxu0 0.0
    %412 = vmatpush2.xpose.msra.mxu0 0.0
    %413 = vmatprep.subr.mxu0 0.0
    %414 = vmatpush2.xpose.msra.mxu0 0.0
    %415 = vmatprep.subr.mxu0 0.0
    %416 = vmatpush2.xpose.msra.mxu0 0.0
    %417 = vmatprep.subr.mxu0 0.0
    %418 = vmatpush2.xpose.msra.mxu0 0.0
    %419 = vmatprep.subr.mxu0 0.0
    %420 = vmatpush2.xpose.msra.mxu0 0.0
    %421 = vmatprep.subr.mxu0 0.0
    %422 = vmatpush2.xpose.msra.mxu0 0.0
    %423 = vmatprep.subr.mxu0 0.0
    %424 = vmatpush2.xpose.msra.mxu0 0.0
    %425 = vmatprep.subr.mxu0 0.0
    %426 = vmatpush2.xpose.msra.mxu0 0.0
    %427 = vmatprep.subr.mxu0 0.0
    %428 = vmatpush2.xpose.msra.mxu0 0.0
    %429 = vmatprep.subr.mxu0 0.0
    %430 = vmatpush2.xpose.msra.mxu0 0.0
    %431 = vmatprep.subr.mxu0 0.0
    %432 = vmatpush2.xpose.msra.mxu0 0.0
    %433 = vmatprep.subr.mxu0 0.0
    %434 = vmatpush2.xpose.msra.mxu0 0.0
    %435 = vmatprep.subr.mxu0 0.0
    %436 = vmatpush2.xpose.msra.mxu0 0.0
    %437 = vmatprep.subr.mxu0 0.0
    %438 = vmatpush2.xpose.msra.mxu0 0.0
    %439 = vmatprep.subr.mxu0 0.0
    %440 = vmatpush2.xpose.msra.mxu0 0.0
    %441 = vmatprep.mubr.f32.mxu0 0.0
    %442 = vmatmul.mubr.f32.gmra.mxu0 %v373
    %v443 = vpop.f32.mrf.mxu0
    %v444 = vadd.f32 0.0, %v443
    %v445 = vpop.f32.mrf.mxu0
    %446 = vdwg.mxu0
    %447 = vrot.lane.b32.xlu0 %v135, 96
    %v448 = vpop.permute.xlu0 %447
    %v449 = vsel %vm144, %v135, 0
    %v451 = vsel %vm144, %v448, 0
    %453 = vmatprep.subr.mxu0 0.0
    %454 = vmatpush1.xpose.msra.mxu0 0.0
    %455 = vmatprep.subr.mxu0 0.0
    %456 = vmatpush1.xpose.msra.mxu0 0.0
    %457 = vmatprep.subr.mxu0 0.0
    %458 = vmatpush1.xpose.msra.mxu0 0.0
    %459 = vmatprep.subr.mxu0 0.0
    %460 = vmatpush1.xpose.msra.mxu0 0.0
    %461 = vmatprep.subr.mxu0 0.0
    %462 = vmatpush1.xpose.msra.mxu0 0.0
    %463 = vmatprep.subr.mxu0 0.0
    %464 = vmatpush1.xpose.msra.mxu0 0.0
    %465 = vmatprep.subr.mxu0 0.0
    %466 = vmatpush1.xpose.msra.mxu0 0.0
    %467 = vmatprep.subr.mxu0 0.0
    %468 = vmatpush1.xpose.msra.mxu0 0.0
    %469 = vmatprep.subr.mxu0 0.0
    %470 = vmatpush1.xpose.msra.mxu0 0.0
    %471 = vmatprep.subr.mxu0 0.0
    %472 = vmatpush1.xpose.msra.mxu0 0.0
    %473 = vmatprep.subr.mxu0 0.0
    %474 = vmatpush1.xpose.msra.mxu0 0.0
    %475 = vmatprep.subr.mxu0 0.0
    %476 = vmatpush1.xpose.msra.mxu0 0.0
    %477 = vmatprep.subr.mxu0 0.0
    %478 = vmatpush1.xpose.msra.mxu0 0.0
    %479 = vmatprep.subr.mxu0 0.0
    %480 = vmatpush1.xpose.msra.mxu0 0.0
    %481 = vmatprep.subr.mxu0 0.0
    %482 = vmatpush1.xpose.msra.mxu0 0.0
    %483 = vmatprep.subr.mxu0 0.0
    %484 = vmatpush1.xpose.msra.mxu0 %v451
    %485 = vmatprep.subr.mxu0 0.0
    %486 = vmatpush2.xpose.msra.mxu0 0.0
    %487 = vmatprep.subr.mxu0 0.0
    %488 = vmatpush2.xpose.msra.mxu0 0.0
    %489 = vmatprep.subr.mxu0 0.0
    %490 = vmatpush2.xpose.msra.mxu0 0.0
    %491 = vmatprep.subr.mxu0 0.0
    %492 = vmatpush2.xpose.msra.mxu0 0.0
    %493 = vmatprep.subr.mxu0 0.0
    %494 = vmatpush2.xpose.msra.mxu0 0.0
    %495 = vmatprep.subr.mxu0 0.0
    %496 = vmatpush2.xpose.msra.mxu0 0.0
    %497 = vmatprep.subr.mxu0 0.0
    %498 = vmatpush2.xpose.msra.mxu0 0.0
    %499 = vmatprep.subr.mxu0 0.0
    %500 = vmatpush2.xpose.msra.mxu0 0.0
    %501 = vmatprep.subr.mxu0 0.0
    %502 = vmatpush2.xpose.msra.mxu0 0.0
    %503 = vmatprep.subr.mxu0 0.0
    %504 = vmatpush2.xpose.msra.mxu0 0.0
    %505 = vmatprep.subr.mxu0 0.0
    %506 = vmatpush2.xpose.msra.mxu0 0.0
    %507 = vmatprep.subr.mxu0 0.0
    %508 = vmatpush2.xpose.msra.mxu0 0.0
    %509 = vmatprep.subr.mxu0 0.0
    %510 = vmatpush2.xpose.msra.mxu0 0.0
    %511 = vmatprep.subr.mxu0 0.0
    %512 = vmatpush2.xpose.msra.mxu0 0.0
    %513 = vmatprep.subr.mxu0 0.0
    %514 = vmatpush2.xpose.msra.mxu0 0.0
    %515 = vmatprep.subr.mxu0 0.0
    %516 = vmatpush2.xpose.msra.mxu0 0.0
    %517 = vmatprep.mubr.f32.mxu0 0.0
    %518 = vmatmul.mubr.f32.gmra.mxu0 %v449
    %v519 = vpop.f32.mrf.mxu0
    %v520 = vadd.f32 0.0, %v519
    %v521 = vpop.f32.mrf.mxu0
    %522 = vdwg.mxu0
    %523 = vrot.lane.b32.xlu0 %v137, 96
    %v524 = vpop.permute.xlu0 %523
    %v525 = vsel %vm144, %v137, 0
    %v527 = vsel %vm144, %v524, 0
    %529 = vmatprep.subr.mxu0 0.0
    %530 = vmatpush1.xpose.msra.mxu0 0.0
    %531 = vmatprep.subr.mxu0 0.0
    %532 = vmatpush1.xpose.msra.mxu0 0.0
    %533 = vmatprep.subr.mxu0 0.0
    %534 = vmatpush1.xpose.msra.mxu0 0.0
    %535 = vmatprep.subr.mxu0 0.0
    %536 = vmatpush1.xpose.msra.mxu0 0.0
    %537 = vmatprep.subr.mxu0 0.0
    %538 = vmatpush1.xpose.msra.mxu0 0.0
    %539 = vmatprep.subr.mxu0 0.0
    %540 = vmatpush1.xpose.msra.mxu0 0.0
    %541 = vmatprep.subr.mxu0 0.0
    %542 = vmatpush1.xpose.msra.mxu0 0.0
    %543 = vmatprep.subr.mxu0 0.0
    %544 = vmatpush1.xpose.msra.mxu0 0.0
    %545 = vmatprep.subr.mxu0 0.0
    %546 = vmatpush1.xpose.msra.mxu0 0.0
    %547 = vmatprep.subr.mxu0 0.0
    %548 = vmatpush1.xpose.msra.mxu0 0.0
    %549 = vmatprep.subr.mxu0 0.0
    %550 = vmatpush1.xpose.msra.mxu0 0.0
    %551 = vmatprep.subr.mxu0 0.0
    %552 = vmatpush1.xpose.msra.mxu0 0.0
    %553 = vmatprep.subr.mxu0 0.0
    %554 = vmatpush1.xpose.msra.mxu0 0.0
    %555 = vmatprep.subr.mxu0 0.0
    %556 = vmatpush1.xpose.msra.mxu0 0.0
    %557 = vmatprep.subr.mxu0 0.0
    %558 = vmatpush1.xpose.msra.mxu0 0.0
    %559 = vmatprep.subr.mxu0 0.0
    %560 = vmatpush1.xpose.msra.mxu0 %v527
    %561 = vmatprep.subr.mxu0 0.0
    %562 = vmatpush2.xpose.msra.mxu0 0.0
    %563 = vmatprep.subr.mxu0 0.0
    %564 = vmatpush2.xpose.msra.mxu0 0.0
    %565 = vmatprep.subr.mxu0 0.0
    %566 = vmatpush2.xpose.msra.mxu0 0.0
    %567 = vmatprep.subr.mxu0 0.0
    %568 = vmatpush2.xpose.msra.mxu0 0.0
    %569 = vmatprep.subr.mxu0 0.0
    %570 = vmatpush2.xpose.msra.mxu0 0.0
    %571 = vmatprep.subr.mxu0 0.0
    %572 = vmatpush2.xpose.msra.mxu0 0.0
    %573 = vmatprep.subr.mxu0 0.0
    %574 = vmatpush2.xpose.msra.mxu0 0.0
    %575 = vmatprep.subr.mxu0 0.0
    %576 = vmatpush2.xpose.msra.mxu0 0.0
    %577 = vmatprep.subr.mxu0 0.0
    %578 = vmatpush2.xpose.msra.mxu0 0.0
    %579 = vmatprep.subr.mxu0 0.0
    %580 = vmatpush2.xpose.msra.mxu0 0.0
    %581 = vmatprep.subr.mxu0 0.0
    %582 = vmatpush2.xpose.msra.mxu0 0.0
    %583 = vmatprep.subr.mxu0 0.0
    %584 = vmatpush2.xpose.msra.mxu0 0.0
    %585 = vmatprep.subr.mxu0 0.0
    %586 = vmatpush2.xpose.msra.mxu0 0.0
    %587 = vmatprep.subr.mxu0 0.0
    %588 = vmatpush2.xpose.msra.mxu0 0.0
    %589 = vmatprep.subr.mxu0 0.0
    %590 = vmatpush2.xpose.msra.mxu0 0.0
    %591 = vmatprep.subr.mxu0 0.0
    %592 = vmatpush2.xpose.msra.mxu0 0.0
    %593 = vmatprep.mubr.f32.mxu0 0.0
    %594 = vmatmul.mubr.f32.gmra.mxu0 %v525
    %v595 = vpop.f32.mrf.mxu0
    %v596 = vadd.f32 0.0, %v595
    %v597 = vpop.f32.mrf.mxu0
    %598 = vdwg.mxu0
    %599 = vrot.lane.b32.xlu0 %v139, 96
    %v600 = vpop.permute.xlu0 %599
    %v601 = vsel %vm144, %v139, 0
    %v603 = vsel %vm144, %v600, 0
    %605 = vmatprep.subr.mxu0 0.0
    %606 = vmatpush1.xpose.msra.mxu0 0.0
    %607 = vmatprep.subr.mxu0 0.0
    %608 = vmatpush1.xpose.msra.mxu0 0.0
    %609 = vmatprep.subr.mxu0 0.0
    %610 = vmatpush1.xpose.msra.mxu0 0.0
    %611 = vmatprep.subr.mxu0 0.0
    %612 = vmatpush1.xpose.msra.mxu0 0.0
    %613 = vmatprep.subr.mxu0 0.0
    %614 = vmatpush1.xpose.msra.mxu0 0.0
    %615 = vmatprep.subr.mxu0 0.0
    %616 = vmatpush1.xpose.msra.mxu0 0.0
    %617 = vmatprep.subr.mxu0 0.0
    %618 = vmatpush1.xpose.msra.mxu0 0.0
    %619 = vmatprep.subr.mxu0 0.0
    %620 = vmatpush1.xpose.msra.mxu0 0.0
    %621 = vmatprep.subr.mxu0 0.0
    %622 = vmatpush1.xpose.msra.mxu0 0.0
    %623 = vmatprep.subr.mxu0 0.0
    %624 = vmatpush1.xpose.msra.mxu0 0.0
    %625 = vmatprep.subr.mxu0 0.0
    %626 = vmatpush1.xpose.msra.mxu0 0.0
    %627 = vmatprep.subr.mxu0 0.0
    %628 = vmatpush1.xpose.msra.mxu0 0.0
    %629 = vmatprep.subr.mxu0 0.0
    %630 = vmatpush1.xpose.msra.mxu0 0.0
    %631 = vmatprep.subr.mxu0 0.0
    %632 = vmatpush1.xpose.msra.mxu0 0.0
    %633 = vmatprep.subr.mxu0 0.0
    %634 = vmatpush1.xpose.msra.mxu0 0.0
    %635 = vmatprep.subr.mxu0 0.0
    %636 = vmatpush1.xpose.msra.mxu0 %v603
    %637 = vmatprep.subr.mxu0 0.0
    %638 = vmatpush2.xpose.msra.mxu0 0.0
    %639 = vmatprep.subr.mxu0 0.0
    %640 = vmatpush2.xpose.msra.mxu0 0.0
    %641 = vmatprep.subr.mxu0 0.0
    %642 = vmatpush2.xpose.msra.mxu0 0.0
    %643 = vmatprep.subr.mxu0 0.0
    %644 = vmatpush2.xpose.msra.mxu0 0.0
    %645 = vmatprep.subr.mxu0 0.0
    %646 = vmatpush2.xpose.msra.mxu0 0.0
    %647 = vmatprep.subr.mxu0 0.0
    %648 = vmatpush2.xpose.msra.mxu0 0.0
    %649 = vmatprep.subr.mxu0 0.0
    %650 = vmatpush2.xpose.msra.mxu0 0.0
    %651 = vmatprep.subr.mxu0 0.0
    %652 = vmatpush2.xpose.msra.mxu0 0.0
    %653 = vmatprep.subr.mxu0 0.0
    %654 = vmatpush2.xpose.msra.mxu0 0.0
    %655 = vmatprep.subr.mxu0 0.0
    %656 = vmatpush2.xpose.msra.mxu0 0.0
    %657 = vmatprep.subr.mxu0 0.0
    %658 = vmatpush2.xpose.msra.mxu0 0.0
    %659 = vmatprep.subr.mxu0 0.0
    %660 = vmatpush2.xpose.msra.mxu0 0.0
    %661 = vmatprep.subr.mxu0 0.0
    %662 = vmatpush2.xpose.msra.mxu0 0.0
    %663 = vmatprep.subr.mxu0 0.0
    %664 = vmatpush2.xpose.msra.mxu0 0.0
    %665 = vmatprep.subr.mxu0 0.0
    %666 = vmatpush2.xpose.msra.mxu0 0.0
    %667 = vmatprep.subr.mxu0 0.0
    %668 = vmatpush2.xpose.msra.mxu0 0.0
    %669 = vmatprep.mubr.f32.mxu0 0.0
    %670 = vmatmul.mubr.f32.gmra.mxu0 %v601
    %v671 = vpop.f32.mrf.mxu0
    %v672 = vadd.f32 0.0, %v671
    %v673 = vpop.f32.mrf.mxu0
    %674 = vdwg.mxu0
    %675 = vrot.lane.b32.xlu0 %v141, 96
    %v676 = vpop.permute.xlu0 %675
    %v677 = vsel %vm144, %v141, 0
    %v679 = vsel %vm144, %v676, 0
    %681 = vmatprep.subr.mxu0 0.0
    %682 = vmatpush1.xpose.msra.mxu0 0.0
    %683 = vmatprep.subr.mxu0 0.0
    %684 = vmatpush1.xpose.msra.mxu0 0.0
    %685 = vmatprep.subr.mxu0 0.0
    %686 = vmatpush1.xpose.msra.mxu0 0.0
    %687 = vmatprep.subr.mxu0 0.0
    %688 = vmatpush1.xpose.msra.mxu0 0.0
    %689 = vmatprep.subr.mxu0 0.0
    %690 = vmatpush1.xpose.msra.mxu0 0.0
    %691 = vmatprep.subr.mxu0 0.0
    %692 = vmatpush1.xpose.msra.mxu0 0.0
    %693 = vmatprep.subr.mxu0 0.0
    %694 = vmatpush1.xpose.msra.mxu0 0.0
    %695 = vmatprep.subr.mxu0 0.0
    %696 = vmatpush1.xpose.msra.mxu0 0.0
    %697 = vmatprep.subr.mxu0 0.0
    %698 = vmatpush1.xpose.msra.mxu0 0.0
    %699 = vmatprep.subr.mxu0 0.0
    %700 = vmatpush1.xpose.msra.mxu0 0.0
    %701 = vmatprep.subr.mxu0 0.0
    %702 = vmatpush1.xpose.msra.mxu0 0.0
    %703 = vmatprep.subr.mxu0 0.0
    %704 = vmatpush1.xpose.msra.mxu0 0.0
    %705 = vmatprep.subr.mxu0 0.0
    %706 = vmatpush1.xpose.msra.mxu0 0.0
    %707 = vmatprep.subr.mxu0 0.0
    %708 = vmatpush1.xpose.msra.mxu0 0.0
    %709 = vmatprep.subr.mxu0 0.0
    %710 = vmatpush1.xpose.msra.mxu0 0.0
    %711 = vmatprep.subr.mxu0 0.0
    %712 = vmatpush1.xpose.msra.mxu0 %v679
    %713 = vmatprep.subr.mxu0 0.0
    %714 = vmatpush2.xpose.msra.mxu0 0.0
    %715 = vmatprep.subr.mxu0 0.0
    %716 = vmatpush2.xpose.msra.mxu0 0.0
    %717 = vmatprep.subr.mxu0 0.0
    %718 = vmatpush2.xpose.msra.mxu0 0.0
    %719 = vmatprep.subr.mxu0 0.0
    %720 = vmatpush2.xpose.msra.mxu0 0.0
    %721 = vmatprep.subr.mxu0 0.0
    %722 = vmatpush2.xpose.msra.mxu0 0.0
    %723 = vmatprep.subr.mxu0 0.0
    %724 = vmatpush2.xpose.msra.mxu0 0.0
    %725 = vmatprep.subr.mxu0 0.0
    %726 = vmatpush2.xpose.msra.mxu0 0.0
    %727 = vmatprep.subr.mxu0 0.0
    %728 = vmatpush2.xpose.msra.mxu0 0.0
    %729 = vmatprep.subr.mxu0 0.0
    %730 = vmatpush2.xpose.msra.mxu0 0.0
    %731 = vmatprep.subr.mxu0 0.0
    %732 = vmatpush2.xpose.msra.mxu0 0.0
    %733 = vmatprep.subr.mxu0 0.0
    %734 = vmatpush2.xpose.msra.mxu0 0.0
    %735 = vmatprep.subr.mxu0 0.0
    %736 = vmatpush2.xpose.msra.mxu0 0.0
    %737 = vmatprep.subr.mxu0 0.0
    %738 = vmatpush2.xpose.msra.mxu0 0.0
    %739 = vmatprep.subr.mxu0 0.0
    %740 = vmatpush2.xpose.msra.mxu0 0.0
    %741 = vmatprep.subr.mxu0 0.0
    %742 = vmatpush2.xpose.msra.mxu0 0.0
    %743 = vmatprep.subr.mxu0 0.0
    %744 = vmatpush2.xpose.msra.mxu0 0.0
    %745 = vmatprep.mubr.f32.mxu0 0.0
    %746 = vmatmul.mubr.f32.gmra.mxu0 %v677
    %v747 = vpop.f32.mrf.mxu0
    %v748 = vadd.f32 0.0, %v747
    %v749 = vpop.f32.mrf.mxu0
    %750 = vdwg.mxu0
    %v751 = vsel %vm144, %v216, -inf
    %752 = vmax.xlane.f32.xlu0 %v751
    %v753 = vpop.xlane.xlu0 %752
    %v754 = vsel %vm144, %v292, -inf
    %755 = vmax.xlane.f32.xlu0 %v754
    %v756 = vpop.xlane.xlu0 %755
    %v757 = vsel %vm144, %v368, -inf
    %758 = vmax.xlane.f32.xlu0 %v757
    %v759 = vpop.xlane.xlu0 %758
    %v760 = vsel %vm144, %v444, -inf
    %761 = vmax.xlane.f32.xlu0 %v760
    %v762 = vpop.xlane.xlu0 %761
    %v763 = vsel %vm144, %v520, -inf
    %764 = vmax.xlane.f32.xlu0 %v763
    %v765 = vpop.xlane.xlu0 %764
    %v766 = vsel %vm144, %v596, -inf
    %767 = vmax.xlane.f32.xlu0 %v766
    %v768 = vpop.xlane.xlu0 %767
    %v769 = vsel %vm144, %v672, -inf
    %770 = vmax.xlane.f32.xlu0 %v769
    %v771 = vpop.xlane.xlu0 %770
    %v772 = vsel %vm144, %v748, -inf
    %773 = vmax.xlane.f32.xlu0 %v772
    %v774 = vpop.xlane.xlu0 %773
    %v775 = vsub.f32 %v216, %v753
    %v776 = vsub.f32 %v292, %v756
    %v777 = vsub.f32 %v368, %v759
    %v778 = vsub.f32 %v444, %v762
    %v779 = vsub.f32 %v520, %v765
    %v780 = vsub.f32 %v596, %v768
    %v781 = vsub.f32 %v672, %v771
    %v782 = vsub.f32 %v748, %v774
    %v783 = vmul.f32 %v775, 1.442695
    %v784 = vpow.pop %v783
    %v785 = vmul.f32 %v776, 1.442695
    %v786 = vpow.pop %v785
    %v787 = vmul.f32 %v777, 1.442695
    %v788 = vpow.pop %v787
    %v789 = vmul.f32 %v778, 1.442695
    %v790 = vpow.pop %v789
    %v791 = vmul.f32 %v779, 1.442695
    %v792 = vpow.pop %v791
    %v793 = vmul.f32 %v780, 1.442695
    %v794 = vpow.pop %v793
    %v795 = vmul.f32 %v781, 1.442695
    %v796 = vpow.pop %v795
    %v797 = vmul.f32 %v782, 1.442695
    %v798 = vpow.pop %v797
    %v799 = vsel %vm144, %v784, 0.0
    %800 = vadd.xlane.f32.xlu0 %v799
    %v801 = vpop.xlane.xlu0 %800
    %v802 = vsel %vm144, %v786, 0.0
    %803 = vadd.xlane.f32.xlu0 %v802
    %v804 = vpop.xlane.xlu0 %803
    %v805 = vsel %vm144, %v788, 0.0
    %806 = vadd.xlane.f32.xlu0 %v805
    %v807 = vpop.xlane.xlu0 %806
    %v808 = vsel %vm144, %v790, 0.0
    %809 = vadd.xlane.f32.xlu0 %v808
    %v810 = vpop.xlane.xlu0 %809
    %v811 = vsel %vm144, %v792, 0.0
    %812 = vadd.xlane.f32.xlu0 %v811
    %v813 = vpop.xlane.xlu0 %812
    %v814 = vsel %vm144, %v794, 0.0
    %815 = vadd.xlane.f32.xlu0 %v814
    %v816 = vpop.xlane.xlu0 %815
    %v817 = vsel %vm144, %v796, 0.0
    %818 = vadd.xlane.f32.xlu0 %v817
    %v819 = vpop.xlane.xlu0 %818
    %v820 = vsel %vm144, %v798, 0.0
    %821 = vadd.xlane.f32.xlu0 %v820
    %v822 = vpop.xlane.xlu0 %821
    %v823 = vrcp.pop %v801
    %v824 = vrcp.pop %v804
    %v825 = vrcp.pop %v807
    %v826 = vrcp.pop %v810
    %v827 = vrcp.pop %v813
    %v828 = vrcp.pop %v816
    %v829 = vrcp.pop %v819
    %v830 = vrcp.pop %v822
    %v831 = vmul.f32 %v784, %v823
    %v832 = vmul.f32 %v786, %v824
    %v833 = vmul.f32 %v788, %v825
    %v834 = vmul.f32 %v790, %v826
    %v835 = vmul.f32 %v792, %v827
    %v836 = vmul.f32 %v794, %v828
    %v837 = vmul.f32 %v796, %v829
    %v838 = vmul.f32 %v798, %v830
    %839 = vrot.lane.b32.xlu0 %v120, 64
    %v840 = vpop.permute.xlu0 %839
    %v843 = vsel %vm144, %v831, 0
    %845 = vmatprep.subr.mxu0 0.0
    %846 = vmatpush1.msra.mxu0 0.0
    %847 = vmatprep.subr.mxu0 0.0
    %848 = vmatpush1.msra.mxu0 0.0
    %849 = vmatprep.subr.mxu0 0.0
    %850 = vmatpush1.msra.mxu0 0.0
    %851 = vmatprep.subr.mxu0 0.0
    %852 = vmatpush1.msra.mxu0 0.0
    %853 = vmatprep.subr.mxu0 0.0
    %854 = vmatpush1.msra.mxu0 0.0
    %855 = vmatprep.subr.mxu0 0.0
    %856 = vmatpush1.msra.mxu0 0.0
    %857 = vmatprep.subr.mxu0 0.0
    %858 = vmatpush1.msra.mxu0 0.0
    %859 = vmatprep.subr.mxu0 0.0
    %860 = vmatpush1.msra.mxu0 0.0
    %861 = vmatprep.subr.mxu0 0.0
    %862 = vmatpush1.msra.mxu0 0.0
    %863 = vmatprep.subr.mxu0 0.0
    %864 = vmatpush1.msra.mxu0 0.0
    %865 = vmatprep.subr.mxu0 0.0
    %866 = vmatpush1.msra.mxu0 0.0
    %867 = vmatprep.subr.mxu0 0.0
    %868 = vmatpush1.msra.mxu0 0.0
    %869 = vmatprep.subr.mxu0 0.0
    %870 = vmatpush1.msra.mxu0 0.0
    %871 = vmatprep.subr.mxu0 0.0
    %872 = vmatpush1.msra.mxu0 0.0
    %873 = vmatprep.subr.mxu0 0.0
    %874 = vmatpush1.msra.mxu0 0.0
    %875 = vmatprep.subr.mxu0 0.0
    %876 = vmatpush1.msra.mxu0 %v840
    %877 = vmatprep.subr.mxu0 0.0
    %878 = vmatpush2.msra.mxu0 0.0
    %879 = vmatprep.subr.mxu0 0.0
    %880 = vmatpush2.msra.mxu0 0.0
    %881 = vmatprep.subr.mxu0 0.0
    %882 = vmatpush2.msra.mxu0 0.0
    %883 = vmatprep.subr.mxu0 0.0
    %884 = vmatpush2.msra.mxu0 0.0
    %885 = vmatprep.subr.mxu0 0.0
    %886 = vmatpush2.msra.mxu0 0.0
    %887 = vmatprep.subr.mxu0 0.0
    %888 = vmatpush2.msra.mxu0 0.0
    %889 = vmatprep.subr.mxu0 0.0
    %890 = vmatpush2.msra.mxu0 0.0
    %891 = vmatprep.subr.mxu0 0.0
    %892 = vmatpush2.msra.mxu0 0.0
    %893 = vmatprep.subr.mxu0 0.0
    %894 = vmatpush2.msra.mxu0 0.0
    %895 = vmatprep.subr.mxu0 0.0
    %896 = vmatpush2.msra.mxu0 0.0
    %897 = vmatprep.subr.mxu0 0.0
    %898 = vmatpush2.msra.mxu0 0.0
    %899 = vmatprep.subr.mxu0 0.0
    %900 = vmatpush2.msra.mxu0 0.0
    %901 = vmatprep.subr.mxu0 0.0
    %902 = vmatpush2.msra.mxu0 0.0
    %903 = vmatprep.subr.mxu0 0.0
    %904 = vmatpush2.msra.mxu0 0.0
    %905 = vmatprep.subr.mxu0 0.0
    %906 = vmatpush2.msra.mxu0 0.0
    %907 = vmatprep.subr.mxu0 0.0
    %908 = vmatpush2.msra.mxu0 0.0
    %909 = vmatprep.mubr.f32.mxu0 0.0
    %910 = vmatmul.mubr.f32.gmra.mxu0 %v843
    %v911 = vpop.f32.mrf.mxu0
    %v912 = vadd.f32 0.0, %v911
    %v913 = vpop.f32.mrf.mxu0
    %914 = vdwg.mxu0
    %915 = vrot.lane.b32.xlu0 %v125, 64
    %v916 = vpop.permute.xlu0 %915
    %v919 = vsel %vm144, %v832, 0
    %921 = vmatprep.subr.mxu0 0.0
    %922 = vmatpush1.msra.mxu0 0.0
    %923 = vmatprep.subr.mxu0 0.0
    %924 = vmatpush1.msra.mxu0 0.0
    %925 = vmatprep.subr.mxu0 0.0
    %926 = vmatpush1.msra.mxu0 0.0
    %927 = vmatprep.subr.mxu0 0.0
    %928 = vmatpush1.msra.mxu0 0.0
    %929 = vmatprep.subr.mxu0 0.0
    %930 = vmatpush1.msra.mxu0 0.0
    %931 = vmatprep.subr.mxu0 0.0
    %932 = vmatpush1.msra.mxu0 0.0
    %933 = vmatprep.subr.mxu0 0.0
    %934 = vmatpush1.msra.mxu0 0.0
    %935 = vmatprep.subr.mxu0 0.0
    %936 = vmatpush1.msra.mxu0 0.0
    %937 = vmatprep.subr.mxu0 0.0
    %938 = vmatpush1.msra.mxu0 0.0
    %939 = vmatprep.subr.mxu0 0.0
    %940 = vmatpush1.msra.mxu0 0.0
    %941 = vmatprep.subr.mxu0 0.0
    %942 = vmatpush1.msra.mxu0 0.0
    %943 = vmatprep.subr.mxu0 0.0
    %944 = vmatpush1.msra.mxu0 0.0
    %945 = vmatprep.subr.mxu0 0.0
    %946 = vmatpush1.msra.mxu0 0.0
    %947 = vmatprep.subr.mxu0 0.0
    %948 = vmatpush1.msra.mxu0 0.0
    %949 = vmatprep.subr.mxu0 0.0
    %950 = vmatpush1.msra.mxu0 0.0
    %951 = vmatprep.subr.mxu0 0.0
    %952 = vmatpush1.msra.mxu0 %v916
    %953 = vmatprep.subr.mxu0 0.0
    %954 = vmatpush2.msra.mxu0 0.0
    %955 = vmatprep.subr.mxu0 0.0
    %956 = vmatpush2.msra.mxu0 0.0
    %957 = vmatprep.subr.mxu0 0.0
    %958 = vmatpush2.msra.mxu0 0.0
    %959 = vmatprep.subr.mxu0 0.0
    %960 = vmatpush2.msra.mxu0 0.0
    %961 = vmatprep.subr.mxu0 0.0
    %962 = vmatpush2.msra.mxu0 0.0
    %963 = vmatprep.subr.mxu0 0.0
    %964 = vmatpush2.msra.mxu0 0.0
    %965 = vmatprep.subr.mxu0 0.0
    %966 = vmatpush2.msra.mxu0 0.0
    %967 = vmatprep.subr.mxu0 0.0
    %968 = vmatpush2.msra.mxu0 0.0
    %969 = vmatprep.subr.mxu0 0.0
    %970 = vmatpush2.msra.mxu0 0.0
    %971 = vmatprep.subr.mxu0 0.0
    %972 = vmatpush2.msra.mxu0 0.0
    %973 = vmatprep.subr.mxu0 0.0
    %974 = vmatpush2.msra.mxu0 0.0
    %975 = vmatprep.subr.mxu0 0.0
    %976 = vmatpush2.msra.mxu0 0.0
    %977 = vmatprep.subr.mxu0 0.0
    %978 = vmatpush2.msra.mxu0 0.0
    %979 = vmatprep.subr.mxu0 0.0
    %980 = vmatpush2.msra.mxu0 0.0
    %981 = vmatprep.subr.mxu0 0.0
    %982 = vmatpush2.msra.mxu0 0.0
    %983 = vmatprep.subr.mxu0 0.0
    %984 = vmatpush2.msra.mxu0 0.0
    %985 = vmatprep.mubr.f32.mxu0 0.0
    %986 = vmatmul.mubr.f32.gmra.mxu0 %v919
    %v987 = vpop.f32.mrf.mxu0
    %v988 = vadd.f32 0.0, %v987
    %v989 = vpop.f32.mrf.mxu0
    %990 = vdwg.mxu0
    %991 = vrot.lane.b32.xlu0 %v131, 64
    %v992 = vpop.permute.xlu0 %991
    %v995 = vsel %vm144, %v833, 0
    %997 = vmatprep.subr.mxu0 0.0
    %998 = vmatpush1.msra.mxu0 0.0
    %999 = vmatprep.subr.mxu0 0.0
    %1000 = vmatpush1.msra.mxu0 0.0
    %1001 = vmatprep.subr.mxu0 0.0
    %1002 = vmatpush1.msra.mxu0 0.0
    %1003 = vmatprep.subr.mxu0 0.0
    %1004 = vmatpush1.msra.mxu0 0.0
    %1005 = vmatprep.subr.mxu0 0.0
    %1006 = vmatpush1.msra.mxu0 0.0
    %1007 = vmatprep.subr.mxu0 0.0
    %1008 = vmatpush1.msra.mxu0 0.0
    %1009 = vmatprep.subr.mxu0 0.0
    %1010 = vmatpush1.msra.mxu0 0.0
    %1011 = vmatprep.subr.mxu0 0.0
    %1012 = vmatpush1.msra.mxu0 0.0
    %1013 = vmatprep.subr.mxu0 0.0
    %1014 = vmatpush1.msra.mxu0 0.0
    %1015 = vmatprep.subr.mxu0 0.0
    %1016 = vmatpush1.msra.mxu0 0.0
    %1017 = vmatprep.subr.mxu0 0.0
    %1018 = vmatpush1.msra.mxu0 0.0
    %1019 = vmatprep.subr.mxu0 0.0
    %1020 = vmatpush1.msra.mxu0 0.0
    %1021 = vmatprep.subr.mxu0 0.0
    %1022 = vmatpush1.msra.mxu0 0.0
    %1023 = vmatprep.subr.mxu0 0.0
    %1024 = vmatpush1.msra.mxu0 0.0
    %1025 = vmatprep.subr.mxu0 0.0
    %1026 = vmatpush1.msra.mxu0 0.0
    %1027 = vmatprep.subr.mxu0 0.0
    %1028 = vmatpush1.msra.mxu0 %v992
    %1029 = vmatprep.subr.mxu0 0.0
    %1030 = vmatpush2.msra.mxu0 0.0
    %1031 = vmatprep.subr.mxu0 0.0
    %1032 = vmatpush2.msra.mxu0 0.0
    %1033 = vmatprep.subr.mxu0 0.0
    %1034 = vmatpush2.msra.mxu0 0.0
    %1035 = vmatprep.subr.mxu0 0.0
    %1036 = vmatpush2.msra.mxu0 0.0
    %1037 = vmatprep.subr.mxu0 0.0
    %1038 = vmatpush2.msra.mxu0 0.0
    %1039 = vmatprep.subr.mxu0 0.0
    %1040 = vmatpush2.msra.mxu0 0.0
    %1041 = vmatprep.subr.mxu0 0.0
    %1042 = vmatpush2.msra.mxu0 0.0
    %1043 = vmatprep.subr.mxu0 0.0
    %1044 = vmatpush2.msra.mxu0 0.0
    %1045 = vmatprep.subr.mxu0 0.0
    %1046 = vmatpush2.msra.mxu0 0.0
    %1047 = vmatprep.subr.mxu0 0.0
    %1048 = vmatpush2.msra.mxu0 0.0
    %1049 = vmatprep.subr.mxu0 0.0
    %1050 = vmatpush2.msra.mxu0 0.0
    %1051 = vmatprep.subr.mxu0 0.0
    %1052 = vmatpush2.msra.mxu0 0.0
    %1053 = vmatprep.subr.mxu0 0.0
    %1054 = vmatpush2.msra.mxu0 0.0
    %1055 = vmatprep.subr.mxu0 0.0
    %1056 = vmatpush2.msra.mxu0 0.0
    %1057 = vmatprep.subr.mxu0 0.0
    %1058 = vmatpush2.msra.mxu0 0.0
    %1059 = vmatprep.subr.mxu0 0.0
    %1060 = vmatpush2.msra.mxu0 0.0
    %1061 = vmatprep.mubr.f32.mxu0 0.0
    %1062 = vmatmul.mubr.f32.gmra.mxu0 %v995
    %v1063 = vpop.f32.mrf.mxu0
    %v1064 = vadd.f32 0.0, %v1063
    %v1065 = vpop.f32.mrf.mxu0
    %1066 = vdwg.mxu0
    %1067 = vrot.lane.b32.xlu0 %v133, 64
    %v1068 = vpop.permute.xlu0 %1067
    %v1071 = vsel %vm144, %v834, 0
    %1073 = vmatprep.subr.mxu0 0.0
    %1074 = vmatpush1.msra.mxu0 0.0
    %1075 = vmatprep.subr.mxu0 0.0
    %1076 = vmatpush1.msra.mxu0 0.0
    %1077 = vmatprep.subr.mxu0 0.0
    %1078 = vmatpush1.msra.mxu0 0.0
    %1079 = vmatprep.subr.mxu0 0.0
    %1080 = vmatpush1.msra.mxu0 0.0
    %1081 = vmatprep.subr.mxu0 0.0
    %1082 = vmatpush1.msra.mxu0 0.0
    %1083 = vmatprep.subr.mxu0 0.0
    %1084 = vmatpush1.msra.mxu0 0.0
    %1085 = vmatprep.subr.mxu0 0.0
    %1086 = vmatpush1.msra.mxu0 0.0
    %1087 = vmatprep.subr.mxu0 0.0
    %1088 = vmatpush1.msra.mxu0 0.0
    %1089 = vmatprep.subr.mxu0 0.0
    %1090 = vmatpush1.msra.mxu0 0.0
    %1091 = vmatprep.subr.mxu0 0.0
    %1092 = vmatpush1.msra.mxu0 0.0
    %1093 = vmatprep.subr.mxu0 0.0
    %1094 = vmatpush1.msra.mxu0 0.0
    %1095 = vmatprep.subr.mxu0 0.0
    %1096 = vmatpush1.msra.mxu0 0.0
    %1097 = vmatprep.subr.mxu0 0.0
    %1098 = vmatpush1.msra.mxu0 0.0
    %1099 = vmatprep.subr.mxu0 0.0
    %1100 = vmatpush1.msra.mxu0 0.0
    %1101 = vmatprep.subr.mxu0 0.0
    %1102 = vmatpush1.msra.mxu0 0.0
    %1103 = vmatprep.subr.mxu0 0.0
    %1104 = vmatpush1.msra.mxu0 %v1068
    %1105 = vmatprep.subr.mxu0 0.0
    %1106 = vmatpush2.msra.mxu0 0.0
    %1107 = vmatprep.subr.mxu0 0.0
    %1108 = vmatpush2.msra.mxu0 0.0
    %1109 = vmatprep.subr.mxu0 0.0
    %1110 = vmatpush2.msra.mxu0 0.0
    %1111 = vmatprep.subr.mxu0 0.0
    %1112 = vmatpush2.msra.mxu0 0.0
    %1113 = vmatprep.subr.mxu0 0.0
    %1114 = vmatpush2.msra.mxu0 0.0
    %1115 = vmatprep.subr.mxu0 0.0
    %1116 = vmatpush2.msra.mxu0 0.0
    %1117 = vmatprep.subr.mxu0 0.0
    %1118 = vmatpush2.msra.mxu0 0.0
    %1119 = vmatprep.subr.mxu0 0.0
    %1120 = vmatpush2.msra.mxu0 0.0
    %1121 = vmatprep.subr.mxu0 0.0
    %1122 = vmatpush2.msra.mxu0 0.0
    %1123 = vmatprep.subr.mxu0 0.0
    %1124 = vmatpush2.msra.mxu0 0.0
    %1125 = vmatprep.subr.mxu0 0.0
    %1126 = vmatpush2.msra.mxu0 0.0
    %1127 = vmatprep.subr.mxu0 0.0
    %1128 = vmatpush2.msra.mxu0 0.0
    %1129 = vmatprep.subr.mxu0 0.0
    %1130 = vmatpush2.msra.mxu0 0.0
    %1131 = vmatprep.subr.mxu0 0.0
    %1132 = vmatpush2.msra.mxu0 0.0
    %1133 = vmatprep.subr.mxu0 0.0
    %1134 = vmatpush2.msra.mxu0 0.0
    %1135 = vmatprep.subr.mxu0 0.0
    %1136 = vmatpush2.msra.mxu0 0.0
    %1137 = vmatprep.mubr.f32.mxu0 0.0
    %1138 = vmatmul.mubr.f32.gmra.mxu0 %v1071
    %v1139 = vpop.f32.mrf.mxu0
    %v1140 = vadd.f32 0.0, %v1139
    %v1141 = vpop.f32.mrf.mxu0
    %1142 = vdwg.mxu0
    %1143 = vrot.lane.b32.xlu0 %v135, 64
    %v1144 = vpop.permute.xlu0 %1143
    %v1147 = vsel %vm144, %v835, 0
    %1149 = vmatprep.subr.mxu0 0.0
    %1150 = vmatpush1.msra.mxu0 0.0
    %1151 = vmatprep.subr.mxu0 0.0
    %1152 = vmatpush1.msra.mxu0 0.0
    %1153 = vmatprep.subr.mxu0 0.0
    %1154 = vmatpush1.msra.mxu0 0.0
    %1155 = vmatprep.subr.mxu0 0.0
    %1156 = vmatpush1.msra.mxu0 0.0
    %1157 = vmatprep.subr.mxu0 0.0
    %1158 = vmatpush1.msra.mxu0 0.0
    %1159 = vmatprep.subr.mxu0 0.0
    %1160 = vmatpush1.msra.mxu0 0.0
    %1161 = vmatprep.subr.mxu0 0.0
    %1162 = vmatpush1.msra.mxu0 0.0
    %1163 = vmatprep.subr.mxu0 0.0
    %1164 = vmatpush1.msra.mxu0 0.0
    %1165 = vmatprep.subr.mxu0 0.0
    %1166 = vmatpush1.msra.mxu0 0.0
    %1167 = vmatprep.subr.mxu0 0.0
    %1168 = vmatpush1.msra.mxu0 0.0
    %1169 = vmatprep.subr.mxu0 0.0
    %1170 = vmatpush1.msra.mxu0 0.0
    %1171 = vmatprep.subr.mxu0 0.0
    %1172 = vmatpush1.msra.mxu0 0.0
    %1173 = vmatprep.subr.mxu0 0.0
    %1174 = vmatpush1.msra.mxu0 0.0
    %1175 = vmatprep.subr.mxu0 0.0
    %1176 = vmatpush1.msra.mxu0 0.0
    %1177 = vmatprep.subr.mxu0 0.0
    %1178 = vmatpush1.msra.mxu0 0.0
    %1179 = vmatprep.subr.mxu0 0.0
    %1180 = vmatpush1.msra.mxu0 %v1144
    %1181 = vmatprep.subr.mxu0 0.0
    %1182 = vmatpush2.msra.mxu0 0.0
    %1183 = vmatprep.subr.mxu0 0.0
    %1184 = vmatpush2.msra.mxu0 0.0
    %1185 = vmatprep.subr.mxu0 0.0
    %1186 = vmatpush2.msra.mxu0 0.0
    %1187 = vmatprep.subr.mxu0 0.0
    %1188 = vmatpush2.msra.mxu0 0.0
    %1189 = vmatprep.subr.mxu0 0.0
    %1190 = vmatpush2.msra.mxu0 0.0
    %1191 = vmatprep.subr.mxu0 0.0
    %1192 = vmatpush2.msra.mxu0 0.0
    %1193 = vmatprep.subr.mxu0 0.0
    %1194 = vmatpush2.msra.mxu0 0.0
    %1195 = vmatprep.subr.mxu0 0.0
    %1196 = vmatpush2.msra.mxu0 0.0
    %1197 = vmatprep.subr.mxu0 0.0
    %1198 = vmatpush2.msra.mxu0 0.0
    %1199 = vmatprep.subr.mxu0 0.0
    %1200 = vmatpush2.msra.mxu0 0.0
    %1201 = vmatprep.subr.mxu0 0.0
    %1202 = vmatpush2.msra.mxu0 0.0
    %1203 = vmatprep.subr.mxu0 0.0
    %1204 = vmatpush2.msra.mxu0 0.0
    %1205 = vmatprep.subr.mxu0 0.0
    %1206 = vmatpush2.msra.mxu0 0.0
    %1207 = vmatprep.subr.mxu0 0.0
    %1208 = vmatpush2.msra.mxu0 0.0
    %1209 = vmatprep.subr.mxu0 0.0
    %1210 = vmatpush2.msra.mxu0 0.0
    %1211 = vmatprep.subr.mxu0 0.0
    %1212 = vmatpush2.msra.mxu0 0.0
    %1213 = vmatprep.mubr.f32.mxu0 0.0
    %1214 = vmatmul.mubr.f32.gmra.mxu0 %v1147
    %v1215 = vpop.f32.mrf.mxu0
    %v1216 = vadd.f32 0.0, %v1215
    %v1217 = vpop.f32.mrf.mxu0
    %1218 = vdwg.mxu0
    %1219 = vrot.lane.b32.xlu0 %v137, 64
    %v1220 = vpop.permute.xlu0 %1219
    %v1223 = vsel %vm144, %v836, 0
    %1225 = vmatprep.subr.mxu0 0.0
    %1226 = vmatpush1.msra.mxu0 0.0
    %1227 = vmatprep.subr.mxu0 0.0
    %1228 = vmatpush1.msra.mxu0 0.0
    %1229 = vmatprep.subr.mxu0 0.0
    %1230 = vmatpush1.msra.mxu0 0.0
    %1231 = vmatprep.subr.mxu0 0.0
    %1232 = vmatpush1.msra.mxu0 0.0
    %1233 = vmatprep.subr.mxu0 0.0
    %1234 = vmatpush1.msra.mxu0 0.0
    %1235 = vmatprep.subr.mxu0 0.0
    %1236 = vmatpush1.msra.mxu0 0.0
    %1237 = vmatprep.subr.mxu0 0.0
    %1238 = vmatpush1.msra.mxu0 0.0
    %1239 = vmatprep.subr.mxu0 0.0
    %1240 = vmatpush1.msra.mxu0 0.0
    %1241 = vmatprep.subr.mxu0 0.0
    %1242 = vmatpush1.msra.mxu0 0.0
    %1243 = vmatprep.subr.mxu0 0.0
    %1244 = vmatpush1.msra.mxu0 0.0
    %1245 = vmatprep.subr.mxu0 0.0
    %1246 = vmatpush1.msra.mxu0 0.0
    %1247 = vmatprep.subr.mxu0 0.0
    %1248 = vmatpush1.msra.mxu0 0.0
    %1249 = vmatprep.subr.mxu0 0.0
    %1250 = vmatpush1.msra.mxu0 0.0
    %1251 = vmatprep.subr.mxu0 0.0
    %1252 = vmatpush1.msra.mxu0 0.0
    %1253 = vmatprep.subr.mxu0 0.0
    %1254 = vmatpush1.msra.mxu0 0.0
    %1255 = vmatprep.subr.mxu0 0.0
    %1256 = vmatpush1.msra.mxu0 %v1220
    %1257 = vmatprep.subr.mxu0 0.0
    %1258 = vmatpush2.msra.mxu0 0.0
    %1259 = vmatprep.subr.mxu0 0.0
    %1260 = vmatpush2.msra.mxu0 0.0
    %1261 = vmatprep.subr.mxu0 0.0
    %1262 = vmatpush2.msra.mxu0 0.0
    %1263 = vmatprep.subr.mxu0 0.0
    %1264 = vmatpush2.msra.mxu0 0.0
    %1265 = vmatprep.subr.mxu0 0.0
    %1266 = vmatpush2.msra.mxu0 0.0
    %1267 = vmatprep.subr.mxu0 0.0
    %1268 = vmatpush2.msra.mxu0 0.0
    %1269 = vmatprep.subr.mxu0 0.0
    %1270 = vmatpush2.msra.mxu0 0.0
    %1271 = vmatprep.subr.mxu0 0.0
    %1272 = vmatpush2.msra.mxu0 0.0
    %1273 = vmatprep.subr.mxu0 0.0
    %1274 = vmatpush2.msra.mxu0 0.0
    %1275 = vmatprep.subr.mxu0 0.0
    %1276 = vmatpush2.msra.mxu0 0.0
    %1277 = vmatprep.subr.mxu0 0.0
    %1278 = vmatpush2.msra.mxu0 0.0
    %1279 = vmatprep.subr.mxu0 0.0
    %1280 = vmatpush2.msra.mxu0 0.0
    %1281 = vmatprep.subr.mxu0 0.0
    %1282 = vmatpush2.msra.mxu0 0.0
    %1283 = vmatprep.subr.mxu0 0.0
    %1284 = vmatpush2.msra.mxu0 0.0
    %1285 = vmatprep.subr.mxu0 0.0
    %1286 = vmatpush2.msra.mxu0 0.0
    %1287 = vmatprep.subr.mxu0 0.0
    %1288 = vmatpush2.msra.mxu0 0.0
    %1289 = vmatprep.mubr.f32.mxu0 0.0
    %1290 = vmatmul.mubr.f32.gmra.mxu0 %v1223
    %v1291 = vpop.f32.mrf.mxu0
    %v1292 = vadd.f32 0.0, %v1291
    %v1293 = vpop.f32.mrf.mxu0
    %1294 = vdwg.mxu0
    %1295 = vrot.lane.b32.xlu0 %v139, 64
    %v1296 = vpop.permute.xlu0 %1295
    %v1299 = vsel %vm144, %v837, 0
    %1301 = vmatprep.subr.mxu0 0.0
    %1302 = vmatpush1.msra.mxu0 0.0
    %1303 = vmatprep.subr.mxu0 0.0
    %1304 = vmatpush1.msra.mxu0 0.0
    %1305 = vmatprep.subr.mxu0 0.0
    %1306 = vmatpush1.msra.mxu0 0.0
    %1307 = vmatprep.subr.mxu0 0.0
    %1308 = vmatpush1.msra.mxu0 0.0
    %1309 = vmatprep.subr.mxu0 0.0
    %1310 = vmatpush1.msra.mxu0 0.0
    %1311 = vmatprep.subr.mxu0 0.0
    %1312 = vmatpush1.msra.mxu0 0.0
    %1313 = vmatprep.subr.mxu0 0.0
    %1314 = vmatpush1.msra.mxu0 0.0
    %1315 = vmatprep.subr.mxu0 0.0
    %1316 = vmatpush1.msra.mxu0 0.0
    %1317 = vmatprep.subr.mxu0 0.0
    %1318 = vmatpush1.msra.mxu0 0.0
    %1319 = vmatprep.subr.mxu0 0.0
    %1320 = vmatpush1.msra.mxu0 0.0
    %1321 = vmatprep.subr.mxu0 0.0
    %1322 = vmatpush1.msra.mxu0 0.0
    %1323 = vmatprep.subr.mxu0 0.0
    %1324 = vmatpush1.msra.mxu0 0.0
    %1325 = vmatprep.subr.mxu0 0.0
    %1326 = vmatpush1.msra.mxu0 0.0
    %1327 = vmatprep.subr.mxu0 0.0
    %1328 = vmatpush1.msra.mxu0 0.0
    %1329 = vmatprep.subr.mxu0 0.0
    %1330 = vmatpush1.msra.mxu0 0.0
    %1331 = vmatprep.subr.mxu0 0.0
    %1332 = vmatpush1.msra.mxu0 %v1296
    %1333 = vmatprep.subr.mxu0 0.0
    %1334 = vmatpush2.msra.mxu0 0.0
    %1335 = vmatprep.subr.mxu0 0.0
    %1336 = vmatpush2.msra.mxu0 0.0
    %1337 = vmatprep.subr.mxu0 0.0
    %1338 = vmatpush2.msra.mxu0 0.0
    %1339 = vmatprep.subr.mxu0 0.0
    %1340 = vmatpush2.msra.mxu0 0.0
    %1341 = vmatprep.subr.mxu0 0.0
    %1342 = vmatpush2.msra.mxu0 0.0
    %1343 = vmatprep.subr.mxu0 0.0
    %1344 = vmatpush2.msra.mxu0 0.0
    %1345 = vmatprep.subr.mxu0 0.0
    %1346 = vmatpush2.msra.mxu0 0.0
    %1347 = vmatprep.subr.mxu0 0.0
    %1348 = vmatpush2.msra.mxu0 0.0
    %1349 = vmatprep.subr.mxu0 0.0
    %1350 = vmatpush2.msra.mxu0 0.0
    %1351 = vmatprep.subr.mxu0 0.0
    %1352 = vmatpush2.msra.mxu0 0.0
    %1353 = vmatprep.subr.mxu0 0.0
    %1354 = vmatpush2.msra.mxu0 0.0
    %1355 = vmatprep.subr.mxu0 0.0
    %1356 = vmatpush2.msra.mxu0 0.0
    %1357 = vmatprep.subr.mxu0 0.0
    %1358 = vmatpush2.msra.mxu0 0.0
    %1359 = vmatprep.subr.mxu0 0.0
    %1360 = vmatpush2.msra.mxu0 0.0
    %1361 = vmatprep.subr.mxu0 0.0
    %1362 = vmatpush2.msra.mxu0 0.0
    %1363 = vmatprep.subr.mxu0 0.0
    %1364 = vmatpush2.msra.mxu0 0.0
    %1365 = vmatprep.mubr.f32.mxu0 0.0
    %1366 = vmatmul.mubr.f32.gmra.mxu0 %v1299
    %v1367 = vpop.f32.mrf.mxu0
    %v1368 = vadd.f32 0.0, %v1367
    %v1369 = vpop.f32.mrf.mxu0
    %1370 = vdwg.mxu0
    %1371 = vrot.lane.b32.xlu0 %v141, 64
    %v1372 = vpop.permute.xlu0 %1371
    %v1375 = vsel %vm144, %v838, 0
    %1377 = vmatprep.subr.mxu0 0.0
    %1378 = vmatpush1.msra.mxu0 0.0
    %1379 = vmatprep.subr.mxu0 0.0
    %1380 = vmatpush1.msra.mxu0 0.0
    %1381 = vmatprep.subr.mxu0 0.0
    %1382 = vmatpush1.msra.mxu0 0.0
    %1383 = vmatprep.subr.mxu0 0.0
    %1384 = vmatpush1.msra.mxu0 0.0
    %1385 = vmatprep.subr.mxu0 0.0
    %1386 = vmatpush1.msra.mxu0 0.0
    %1387 = vmatprep.subr.mxu0 0.0
    %1388 = vmatpush1.msra.mxu0 0.0
    %1389 = vmatprep.subr.mxu0 0.0
    %1390 = vmatpush1.msra.mxu0 0.0
    %1391 = vmatprep.subr.mxu0 0.0
    %1392 = vmatpush1.msra.mxu0 0.0
    %1393 = vmatprep.subr.mxu0 0.0
    %1394 = vmatpush1.msra.mxu0 0.0
    %1395 = vmatprep.subr.mxu0 0.0
    %1396 = vmatpush1.msra.mxu0 0.0
    %1397 = vmatprep.subr.mxu0 0.0
    %1398 = vmatpush1.msra.mxu0 0.0
    %1399 = vmatprep.subr.mxu0 0.0
    %1400 = vmatpush1.msra.mxu0 0.0
    %1401 = vmatprep.subr.mxu0 0.0
    %1402 = vmatpush1.msra.mxu0 0.0
    %1403 = vmatprep.subr.mxu0 0.0
    %1404 = vmatpush1.msra.mxu0 0.0
    %1405 = vmatprep.subr.mxu0 0.0
    %1406 = vmatpush1.msra.mxu0 0.0
    %1407 = vmatprep.subr.mxu0 0.0
    %1408 = vmatpush1.msra.mxu0 %v1372
    %1409 = vmatprep.subr.mxu0 0.0
    %1410 = vmatpush2.msra.mxu0 0.0
    %1411 = vmatprep.subr.mxu0 0.0
    %1412 = vmatpush2.msra.mxu0 0.0
    %1413 = vmatprep.subr.mxu0 0.0
    %1414 = vmatpush2.msra.mxu0 0.0
    %1415 = vmatprep.subr.mxu0 0.0
    %1416 = vmatpush2.msra.mxu0 0.0
    %1417 = vmatprep.subr.mxu0 0.0
    %1418 = vmatpush2.msra.mxu0 0.0
    %1419 = vmatprep.subr.mxu0 0.0
    %1420 = vmatpush2.msra.mxu0 0.0
    %1421 = vmatprep.subr.mxu0 0.0
    %1422 = vmatpush2.msra.mxu0 0.0
    %1423 = vmatprep.subr.mxu0 0.0
    %1424 = vmatpush2.msra.mxu0 0.0
    %1425 = vmatprep.subr.mxu0 0.0
    %1426 = vmatpush2.msra.mxu0 0.0
    %1427 = vmatprep.subr.mxu0 0.0
    %1428 = vmatpush2.msra.mxu0 0.0
    %1429 = vmatprep.subr.mxu0 0.0
    %1430 = vmatpush2.msra.mxu0 0.0
    %1431 = vmatprep.subr.mxu0 0.0
    %1432 = vmatpush2.msra.mxu0 0.0
    %1433 = vmatprep.subr.mxu0 0.0
    %1434 = vmatpush2.msra.mxu0 0.0
    %1435 = vmatprep.subr.mxu0 0.0
    %1436 = vmatpush2.msra.mxu0 0.0
    %1437 = vmatprep.subr.mxu0 0.0
    %1438 = vmatpush2.msra.mxu0 0.0
    %1439 = vmatprep.subr.mxu0 0.0
    %1440 = vmatpush2.msra.mxu0 0.0
    %1441 = vmatprep.mubr.f32.mxu0 0.0
    %1442 = vmatmul.mubr.f32.gmra.mxu0 %v1375
    %v1443 = vpop.f32.mrf.mxu0
    %v1444 = vadd.f32 0.0, %v1443
    %v1445 = vpop.f32.mrf.mxu0
    %1446 = vdwg.mxu0
    %1449 = vrot.lane.b32.xlu0 %v1064, 8
    %v1450 = vpop.permute.xlu0 %1449
    %1451 = vrot.lane.b32.xlu0 %v1140, 8
    %v1452 = vpop.permute.xlu0 %1451
    %1457 = vrot.lane.b32.xlu0 %v1216, 16
    %v1458 = vpop.permute.xlu0 %1457
    %1459 = vrot.lane.b32.xlu0 %v1292, 16
    %v1460 = vpop.permute.xlu0 %1459
    %1465 = vrot.lane.b32.xlu0 %v1368, 24
    %v1466 = vpop.permute.xlu0 %1465
    %1467 = vrot.lane.b32.xlu0 %v1444, 24
    %v1468 = vpop.permute.xlu0 %1467
    %v1471 = vsel %vm144, %v912, %v1450
    %v1472 = vsel %vm144, %v988, %v1452
    %vm1473 = vcmask 130048
    %v1474 = vsel %vm1473, %v1471, %v1458
    %v1475 = vsel %vm1473, %v1472, %v1460
    %vm1476 = vcmask 195584
    %v1477 = vsel %vm1476, %v1474, %v1466
    %v1478 = vsel %vm1476, %v1475, %v1468
    %v1479 = vadd.f32 %v1477, %v40
    %v1480 = vadd.f32 %v1478, %v41
    %1481 = vst.msk [vmem:[#allocation7] sm:$0xff] %vm46, %v1479
    %1482 = vst.msk [vmem:[#allocation7 + $0x8] sm:$0xff] %vm46, %v1480
    // Predicated region
    $region18: #{tpu_custom_call.1} parent=1 // pred_check
      _
    $region19: #{tpu_custom_call.1} parent=1 // pred_check_branch
      %1484 = sbr.rel (0) target = $region21
    $region20: #{tpu_custom_call.1} parent=1 // pred_region
      %s1486 = ssub.s32 256, 256
      %1487 = vsyncadd [#allocation4], %s1486
      %s1488 = sshll.u32 [#allocation7], 4
      %s1489 = int_to_ptr.vmem [resolvable:$true] %s1488
      %1494 = dma.vmem_to_hbm [thread:$0]  %s1489, 256, %s2, [#allocation4], 128, 128, 8
    $region21: #{tpu_custom_call.1} parent=1 // pred_fallthru
      _
    // Predicated region
    $region22: #{tpu_custom_call.1} parent=1 // pred_check
      _
    $region23: #{tpu_custom_call.1} parent=1 // pred_check_branch
      %1496 = sbr.rel (0) target = $region25
    $region24: #{tpu_custom_call.1} parent=1 // pred_region
      %1497 = dma.done [#allocation4], 256
    $region25: #{tpu_custom_call.1} parent=1 // pred_fallthru
      _
    %1498 = vsyncpa [#allocation3], 1
    %1499 = vsyncpa [#allocation6], 1
    %1500 = vsyncpa [#allocation4], 1

</llo_original>
